<compile_context>
chip_gen: v6e
topology: v6e:2x2x1
jax: 0.10.0
libtpu: 0.0.40
codegen_flags: <defaults>
</compile_context>

<pallas_src>
import numpy as np
import jax
import jax.numpy as jnp
from jax.experimental import pallas as pl
from jax.experimental.pallas import tpu as pltpu

N_QUBITS = 4
FEATURES_PER_QUBIT = 4
INPUT_SIZE = 16
N_STATES = 2 ** N_QUBITS          # 16
N_CLASSES = 10
LANES = 128                       # lane-padded working width (full vreg)

# packed constant-slab row offsets (8-row aligned loads)
ROW_WPRE = 0          # rows 0..15 : pre-processing weight (in=16, out padded to 128)
ROW_BPRE = 16         # row 16     : pre-processing bias
ROW_THETA = 24        # row 24     : trainable circuit angles, flattened
ROW_WPOST = 32        # row 32     : post-processing weight (lanes 0..9)
ROW_BPOST = 40        # row 40     : post-processing bias   (lanes 0..9)
ROW_WPOST2 = 48       # row 48     : post-processing weight copy (lanes 16..25)
ROW_BPOST2 = 56       # row 56     : post-processing bias copy   (lanes 16..25)
ROW_ZSIGN = 64        # row 64     : <Z_0> readout signs with last ring folded in
ROW_PERM = 72         # rows 72..199: 128x128 block-diag CNOT-ring permutation
SLAB_ROWS = 200


# ------------------------- host-side constant setup -------------------------
def build_params_slab():
    """Deterministic parameter init packed into a single [200, 128] f32 slab."""
    k_pre = 1.0 / np.sqrt(INPUT_SIZE)
    kw, kb = jax.random.split(jax.random.PRNGKey(1))
    w_pre = jax.random.uniform(kw, (N_QUBITS * FEATURES_PER_QUBIT, INPUT_SIZE),
                               jnp.float32, -k_pre, k_pre)          # [out, in]
    b_pre = jax.random.uniform(kb, (N_QUBITS * FEATURES_PER_QUBIT,),
                               jnp.float32, -k_pre, k_pre)
    kw2, kb2 = jax.random.split(jax.random.PRNGKey(2))
    w_post = jax.random.uniform(kw2, (N_CLASSES, 1), jnp.float32, -1.0, 1.0)
    b_post = jax.random.uniform(kb2, (N_CLASSES,), jnp.float32, -1.0, 1.0)
    # variational circuit angles, seed=42 as in the module signature
    theta = jax.random.uniform(jax.random.PRNGKey(42),
                               (FEATURES_PER_QUBIT, N_QUBITS),
                               jnp.float32, 0.0, 2.0 * np.pi)

    slab = np.zeros((SLAB_ROWS, LANES), np.float32)
    # angles = x @ W  (W = w_pre.T, out-dim lane-padded to 128)
    slab[ROW_WPRE:ROW_WPRE + INPUT_SIZE, 0:N_QUBITS * FEATURES_PER_QUBIT] = \
        np.asarray(w_pre).T
    slab[ROW_BPRE, 0:N_QUBITS * FEATURES_PER_QUBIT] = np.asarray(b_pre)
    # column f = q*FEATURES_PER_QUBIT + l must hold theta[l, q]
    slab[ROW_THETA, 0:N_QUBITS * FEATURES_PER_QUBIT] = \
        np.asarray(theta).T.reshape(-1)
    slab[ROW_WPOST, 0:N_CLASSES] = np.asarray(w_post)[:, 0]
    slab[ROW_BPOST, 0:N_CLASSES] = np.asarray(b_post)
    # duplicate copy placed at lanes 16..25 so logits land in the output slab
    # without any extra lane rotation
    slab[ROW_WPOST2, 16:16 + N_CLASSES] = np.asarray(w_post)[:, 0]
    slab[ROW_BPOST2, 16:16 + N_CLASSES] = np.asarray(b_post)

    # CNOT-ring permutation sigma: CNOT(q, (q+1)%n) applied q = 0..n-1 in order
    sigma = np.empty(N_STATES, np.int64)
    for s in range(N_STATES):
        v = s
        for qc in range(N_QUBITS):
            t = (qc + 1) % N_QUBITS
            if (v >> qc) & 1:
                v ^= 1 << t
        sigma[s] = v

    # last layer's ring folded into the <Z_0> readout signs: zf(i) = z(sigma(i))
    states = np.arange(N_STATES)
    z0 = np.where((states & 1) == 0, 1.0, -1.0).astype(np.float32)
    slab[ROW_ZSIGN, 0:N_STATES] = z0[sigma]

    # rings of layers 0..L-2 as one block-diagonal 128x128 permutation (MXU):
    # new_sv = sv @ P  with  P[i, sigma(i)] = 1
    for blk in range(LANES // N_STATES):
        for i in range(N_STATES):
            slab[ROW_PERM + blk * N_STATES + i, blk * N_STATES + sigma[i]] = 1.0
    return jnp.asarray(slab)


# --------------------------------- kernel -----------------------------------
def qnn_kernel(x_ref, const_ref, out_ref, c_sc, s_sc):
    x = x_ref[...]                                              # [Bt, 16]
    w_pre = const_ref[ROW_WPRE:ROW_WPRE + INPUT_SIZE, :]        # [16, 128]
    b_pre = const_ref[ROW_BPRE:ROW_BPRE + 1, :]                 # [1, 128]
    theta = const_ref[ROW_THETA:ROW_THETA + 1, :]               # [1, 128]
    w_post = const_ref[ROW_WPOST:ROW_WPOST + 1, :]              # [1, 128] lanes 0..9
    b_post = const_ref[ROW_BPOST:ROW_BPOST + 1, :]              # [1, 128] lanes 0..9
    w_post2 = const_ref[ROW_WPOST2:ROW_WPOST2 + 1, :]           # [1, 128] lanes 16..25
    b_post2 = const_ref[ROW_BPOST2:ROW_BPOST2 + 1, :]           # [1, 128] lanes 16..25
    zsign = const_ref[ROW_ZSIGN:ROW_ZSIGN + 1, :]               # [1, 128]
    perm = const_ref[ROW_PERM:ROW_PERM + LANES, :]              # [128, 128]

    bt = x.shape[0]
    col = jax.lax.broadcasted_iota(jnp.int32, (bt, LANES), 1)
    # per-qubit "bit q of the basis-state index" lane masks (computed once)
    bit = [((col >> q) & 1) == 1 for q in range(N_QUBITS)]

    # ---- pre_processing: Linear(16 -> 16), lane-padded to 128 (MXU) ----
    angles = jnp.dot(x, w_pre, preferred_element_type=jnp.float32) + b_pre

    # ---- hoisted RY transcendentals: two [Bt,128] EUP passes, spilled to
    #      VMEM scratch so the gate loop only keeps sv + a column live ----
    half = 0.5 * (angles + theta)
    c_sc[...] = jnp.cos(half)
    s_sc[...] = jnp.sin(half)

    # |0...0> statevector, lane-padded (pad lanes stay exactly 0 throughout)
    sv = jnp.where(col == 0, 1.0, 0.0).astype(jnp.float32)

    # ---- quantum circuit: data re-uploading RY layers + CNOT rings ----
    for l in range(FEATURES_PER_QUBIT):
        for q in range(N_QUBITS):
            f = q * FEATURES_PER_QUBIT + l
            c = c_sc[:, f:f + 1]                                 # [Bt, 1]
            s = s_sc[:, f:f + 1]
            k = 1 << q
            # RY pair update: new = c*v + s*sign_q*v[i^2^q]  (sign folded in);
            # pad lanes only ever mix with pad lanes, so they stay 0.
            sv = c * sv + s * jnp.where(bit[q],
                                        pltpu.roll(sv, k, 1),
                                        -pltpu.roll(sv, LANES - k, 1))
        if l < FEATURES_PER_QUBIT - 1:
            # entangling ring CNOT(q,(q+1)%n): a pure basis-state permutation,
            # executed as a single 0/1 permutation matmul on the idle MXU.
            sv = jnp.dot(sv, perm, preferred_element_type=jnp.float32)
        # last layer's ring is folded into zsign host-side (no-op here)

    # readout: <Z_0> expectation (with last ring folded into the signs)
    q_out = jnp.sum(sv * sv * zsign, axis=1, keepdims=True)      # [Bt, 1]

    # ---- post_processing: Linear(1 -> 10) as VPU broadcast FMAs ----
    logits = q_out * w_post + b_post                             # lanes 0..9
    logits_hi = q_out * w_post2 + b_post2                        # lanes 16..25

    # ---- softmax over the 10 real classes only ----
    cmask = col < N_CLASSES
    lm = jnp.where(cmask, logits, -1e30)
    m = jnp.max(lm, axis=1, keepdims=True)
    e = jnp.where(cmask, jnp.exp(lm - m), 0.0)
    probs = e / jnp.sum(e, axis=1, keepdims=True)                # lanes 0..9

    # single lane-dense [Bt, 128] slab: probs in lanes 0..9, logits in 16..25
    out_ref[...] = probs + logits_hi


# -------------------------------- wrapper ------------------------------------
def quantum_classifier_forward(x, const_slab, *, b_tile=None):
    B = x.shape[0]
    if b_tile is None:
        # Large tiles amortize the ~600-cycle per-grid-step overhead and make
        # the roll chain throughput-bound, but keep >= ~8 grid steps so v7x's
        # two TensorCores both get work on real MNIST batches. VMEM is never
        # the constraint here (even b_tile=2048 is only a few MiB).
        bt = -(-B // 8)                        # cdiv(B, 8)
        bt = max(8, min(256, bt))
        b_tile = ((bt + 7) // 8) * 8           # sublane-aligned
    pad = (-B) % b_tile
    if pad:
        x = jnp.pad(x, ((0, pad), (0, 0)))
    bp = x.shape[0]

    out = pl.pallas_call(
        qnn_kernel,
        out_shape=jax.ShapeDtypeStruct((bp, LANES), jnp.float32),
        grid=(bp // b_tile,),
        in_specs=[
            pl.BlockSpec((b_tile, INPUT_SIZE), lambda i: (i, 0)),
            pl.BlockSpec((SLAB_ROWS, LANES), lambda i: (0, 0)),
        ],
        out_specs=pl.BlockSpec((b_tile, LANES), lambda i: (i, 0)),
        scratch_shapes=[pltpu.VMEM((b_tile, LANES), jnp.float32),   # cos
                        pltpu.VMEM((b_tile, LANES), jnp.float32)],  # sin
        compiler_params=pltpu.CompilerParams(
            dimension_semantics=("parallel",)),
    )(x, const_slab)

    probs = out[:B, 0:N_CLASSES]
    logits = out[:B, 16:16 + N_CLASSES]
    return probs, logits


# ---------------------------------- main --------------------------------------
if __name__ == "__main__":
    B = 16
    x = jax.random.normal(jax.random.PRNGKey(0), (B, INPUT_SIZE), jnp.float32)

    const_slab = build_params_slab()

    probs, logits = quantum_classifier_forward(x, const_slab)
    probs = jax.block_until_ready(probs)
    logits = jax.block_until_ready(logits)

    assert probs.shape == (B, N_CLASSES) and logits.shape == (B, N_CLASSES)
    assert bool(jnp.all(jnp.isfinite(probs))) and bool(jnp.all(jnp.isfinite(logits)))
    assert bool(jnp.allclose(jnp.sum(probs, axis=1), 1.0, atol=1e-5))
    print("KERNEL_OK")
</pallas_src>

<mosaic_0001>
module attributes {stable_mosaic.version = 11 : i64} {
  func.func @qnn_kernel(%arg0: i32, %arg1: memref<8x16xf32, #tpu.memory_space<vmem>>, %arg2: memref<200x128xf32, #tpu.memory_space<vmem>>, %arg3: memref<8x128xf32, #tpu.memory_space<vmem>>, %arg4: memref<8x128xf32, #tpu.memory_space<vmem>>, %arg5: memref<8x128xf32, #tpu.memory_space<vmem>>) attributes {dimension_semantics = [#tpu.dimension_semantics<parallel>], iteration_bounds = array<i64: 2>, scalar_prefetch = 0 : i64, scratch_operands = 2 : i64, tpu.core_type = #tpu.core_type<tc>, window_params = [{transform_indices = @transform_0, window_bounds = array<i64: 8, 16>}, {pipeline_mode = #tpu.pipeline_mode<synchronous>, transform_indices = @transform_1, window_bounds = array<i64: 200, 128>}, {transform_indices = @transform_2, window_bounds = array<i64: 8, 128>}]} {
    %c0 = arith.constant 0 : index
    %c0_0 = arith.constant 0 : index
    %0 = vector.load %arg1[%c0, %c0_0] : memref<8x16xf32, #tpu.memory_space<vmem>>, vector<8x16xf32>
    %c0_1 = arith.constant 0 : index
    %c0_2 = arith.constant 0 : index
    %1 = vector.load %arg2[%c0_1, %c0_2] : memref<200x128xf32, #tpu.memory_space<vmem>>, vector<16x128xf32>
    %c16 = arith.constant 16 : index
    %c0_3 = arith.constant 0 : index
    %2 = vector.load %arg2[%c16, %c0_3] : memref<200x128xf32, #tpu.memory_space<vmem>>, vector<1x128xf32>
    %c24 = arith.constant 24 : index
    %c0_4 = arith.constant 0 : index
    %3 = vector.load %arg2[%c24, %c0_4] : memref<200x128xf32, #tpu.memory_space<vmem>>, vector<1x128xf32>
    %c32 = arith.constant 32 : index
    %c0_5 = arith.constant 0 : index
    %4 = vector.load %arg2[%c32, %c0_5] : memref<200x128xf32, #tpu.memory_space<vmem>>, vector<1x128xf32>
    %c40 = arith.constant 40 : index
    %c0_6 = arith.constant 0 : index
    %5 = vector.load %arg2[%c40, %c0_6] : memref<200x128xf32, #tpu.memory_space<vmem>>, vector<1x128xf32>
    %c48 = arith.constant 48 : index
    %c0_7 = arith.constant 0 : index
    %6 = vector.load %arg2[%c48, %c0_7] : memref<200x128xf32, #tpu.memory_space<vmem>>, vector<1x128xf32>
    %c56 = arith.constant 56 : index
    %c0_8 = arith.constant 0 : index
    %7 = vector.load %arg2[%c56, %c0_8] : memref<200x128xf32, #tpu.memory_space<vmem>>, vector<1x128xf32>
    %c64 = arith.constant 64 : index
    %c0_9 = arith.constant 0 : index
    %8 = vector.load %arg2[%c64, %c0_9] : memref<200x128xf32, #tpu.memory_space<vmem>>, vector<1x128xf32>
    %c72 = arith.constant 72 : index
    %c0_10 = arith.constant 0 : index
    %9 = vector.load %arg2[%c72, %c0_10] : memref<200x128xf32, #tpu.memory_space<vmem>>, vector<128x128xf32>
    %10 = tpu.iota {dimensions = array<i32: 1>} : vector<8x128xi32>
    %c0_i32 = arith.constant 0 : i32
    %11 = vector.broadcast %c0_i32 : i32 to vector<8x128xi32>
    %12 = arith.shrsi %10, %11 : vector<8x128xi32>
    %c1_i32 = arith.constant 1 : i32
    %13 = vector.broadcast %c1_i32 : i32 to vector<8x128xi32>
    %14 = arith.andi %12, %13 : vector<8x128xi32>
    %c1_i32_11 = arith.constant 1 : i32
    %15 = vector.broadcast %c1_i32_11 : i32 to vector<8x128xi32>
    %16 = arith.cmpi eq, %14, %15 : vector<8x128xi32>
    %c1_i32_12 = arith.constant 1 : i32
    %17 = vector.broadcast %c1_i32_12 : i32 to vector<8x128xi32>
    %18 = arith.shrsi %10, %17 : vector<8x128xi32>
    %c1_i32_13 = arith.constant 1 : i32
    %19 = vector.broadcast %c1_i32_13 : i32 to vector<8x128xi32>
    %20 = arith.andi %18, %19 : vector<8x128xi32>
    %c1_i32_14 = arith.constant 1 : i32
    %21 = vector.broadcast %c1_i32_14 : i32 to vector<8x128xi32>
    %22 = arith.cmpi eq, %20, %21 : vector<8x128xi32>
    %c2_i32 = arith.constant 2 : i32
    %23 = vector.broadcast %c2_i32 : i32 to vector<8x128xi32>
    %24 = arith.shrsi %10, %23 : vector<8x128xi32>
    %c1_i32_15 = arith.constant 1 : i32
    %25 = vector.broadcast %c1_i32_15 : i32 to vector<8x128xi32>
    %26 = arith.andi %24, %25 : vector<8x128xi32>
    %c1_i32_16 = arith.constant 1 : i32
    %27 = vector.broadcast %c1_i32_16 : i32 to vector<8x128xi32>
    %28 = arith.cmpi eq, %26, %27 : vector<8x128xi32>
    %c3_i32 = arith.constant 3 : i32
    %29 = vector.broadcast %c3_i32 : i32 to vector<8x128xi32>
    %30 = arith.shrsi %10, %29 : vector<8x128xi32>
    %c1_i32_17 = arith.constant 1 : i32
    %31 = vector.broadcast %c1_i32_17 : i32 to vector<8x128xi32>
    %32 = arith.andi %30, %31 : vector<8x128xi32>
    %c1_i32_18 = arith.constant 1 : i32
    %33 = vector.broadcast %c1_i32_18 : i32 to vector<8x128xi32>
    %34 = arith.cmpi eq, %32, %33 : vector<8x128xi32>
    %cst = arith.constant dense<0.000000e+00> : vector<8x128xf32>
    %35 = tpu.matmul %0, %1, %cst {dimension_numbers = #tpu.dot_dimension_numbers<[1], [0], [0], [1], [0, 0, 1, 1], [], []>} : vector<8x16xf32>, vector<16x128xf32>, vector<8x128xf32> -> vector<8x128xf32>
    %36 = vector.broadcast %2 : vector<1x128xf32> to vector<8x128xf32>
    %37 = arith.addf %35, %36 : vector<8x128xf32>
    %38 = vector.broadcast %3 : vector<1x128xf32> to vector<8x128xf32>
    %39 = arith.addf %37, %38 : vector<8x128xf32>
    %cst_19 = arith.constant 5.000000e-01 : f32
    %40 = vector.broadcast %cst_19 : f32 to vector<8x128xf32>
    %41 = arith.mulf %40, %39 : vector<8x128xf32>
    %42 = math.cos %41 : vector<8x128xf32>
    %c0_20 = arith.constant 0 : index
    %c0_21 = arith.constant 0 : index
    %43 = vector.load %arg4[%c0_20, %c0_21] : memref<8x128xf32, #tpu.memory_space<vmem>>, vector<8x128xf32>
    tpu.vector_store %arg4[%c0_20, %c0_21], %42 {strides = array<i32>} : memref<8x128xf32, #tpu.memory_space<vmem>>, vector<8x128xf32>,
    %44 = math.sin %41 : vector<8x128xf32>
    %c0_22 = arith.constant 0 : index
    %c0_23 = arith.constant 0 : index
    %45 = vector.load %arg5[%c0_22, %c0_23] : memref<8x128xf32, #tpu.memory_space<vmem>>, vector<8x128xf32>
    tpu.vector_store %arg5[%c0_22, %c0_23], %44 {strides = array<i32>} : memref<8x128xf32, #tpu.memory_space<vmem>>, vector<8x128xf32>,
    %c0_i32_24 = arith.constant 0 : i32
    %46 = vector.broadcast %c0_i32_24 : i32 to vector<8x128xi32>
    %47 = arith.cmpi eq, %10, %46 : vector<8x128xi32>
    %cst_25 = arith.constant 1.000000e+00 : f32
    %cst_26 = arith.constant 0.000000e+00 : f32
    %48 = vector.broadcast %cst_25 : f32 to vector<8x128xf32>
    %49 = vector.broadcast %cst_26 : f32 to vector<8x128xf32>
    %50 = arith.select %47, %48, %49 : vector<8x128xi1>, vector<8x128xf32>
    %c0_27 = arith.constant 0 : index
    %c0_28 = arith.constant 0 : index
    %51 = vector.load %arg4[%c0_27, %c0_28] : memref<8x128xf32, #tpu.memory_space<vmem>>, vector<8x1xf32>
    %c0_29 = arith.constant 0 : index
    %c0_30 = arith.constant 0 : index
    %52 = vector.load %arg5[%c0_29, %c0_30] : memref<8x128xf32, #tpu.memory_space<vmem>>, vector<8x1xf32>
    %53 = vector.broadcast %51 : vector<8x1xf32> to vector<8x128xf32>
    %54 = arith.mulf %53, %50 : vector<8x128xf32>
    %c1_i32_31 = arith.constant 1 : i32
    %55 = tpu.dynamic_rotate %50 by %c1_i32_31 dim 1 : vector<8x128xf32>, i32 -> vector<8x128xf32>
    %c127_i32 = arith.constant 127 : i32
    %56 = tpu.dynamic_rotate %50 by %c127_i32 dim 1 : vector<8x128xf32>, i32 -> vector<8x128xf32>
    %cst_32 = arith.constant 0.000000e+00 : f32
    %57 = vector.broadcast %cst_32 : f32 to vector<8x128xf32>
    %58 = arith.subf %57, %56 : vector<8x128xf32>
    %59 = arith.select %16, %55, %58 : vector<8x128xi1>, vector<8x128xf32>
    %60 = vector.broadcast %52 : vector<8x1xf32> to vector<8x128xf32>
    %61 = arith.mulf %60, %59 : vector<8x128xf32>
    %62 = arith.addf %54, %61 : vector<8x128xf32>
    %c0_33 = arith.constant 0 : index
    %c4 = arith.constant 4 : index
    %63 = vector.load %arg4[%c0_33, %c4] : memref<8x128xf32, #tpu.memory_space<vmem>>, vector<8x1xf32>
    %c0_34 = arith.constant 0 : index
    %c4_35 = arith.constant 4 : index
    %64 = vector.load %arg5[%c0_34, %c4_35] : memref<8x128xf32, #tpu.memory_space<vmem>>, vector<8x1xf32>
    %65 = vector.broadcast %63 : vector<8x1xf32> to vector<8x128xf32>
    %66 = arith.mulf %65, %62 : vector<8x128xf32>
    %c2_i32_36 = arith.constant 2 : i32
    %67 = tpu.dynamic_rotate %62 by %c2_i32_36 dim 1 : vector<8x128xf32>, i32 -> vector<8x128xf32>
    %c126_i32 = arith.constant 126 : i32
    %68 = tpu.dynamic_rotate %62 by %c126_i32 dim 1 : vector<8x128xf32>, i32 -> vector<8x128xf32>
    %cst_37 = arith.constant 0.000000e+00 : f32
    %69 = vector.broadcast %cst_37 : f32 to vector<8x128xf32>
    %70 = arith.subf %69, %68 : vector<8x128xf32>
    %71 = arith.select %22, %67, %70 : vector<8x128xi1>, vector<8x128xf32>
    %72 = vector.broadcast %64 : vector<8x1xf32> to vector<8x128xf32>
    %73 = arith.mulf %72, %71 : vector<8x128xf32>
    %74 = arith.addf %66, %73 : vector<8x128xf32>
    %c0_38 = arith.constant 0 : index
    %c8 = arith.constant 8 : index
    %75 = vector.load %arg4[%c0_38, %c8] : memref<8x128xf32, #tpu.memory_space<vmem>>, vector<8x1xf32>
    %c0_39 = arith.constant 0 : index
    %c8_40 = arith.constant 8 : index
    %76 = vector.load %arg5[%c0_39, %c8_40] : memref<8x128xf32, #tpu.memory_space<vmem>>, vector<8x1xf32>
    %77 = vector.broadcast %75 : vector<8x1xf32> to vector<8x128xf32>
    %78 = arith.mulf %77, %74 : vector<8x128xf32>
    %c4_i32 = arith.constant 4 : i32
    %79 = tpu.dynamic_rotate %74 by %c4_i32 dim 1 : vector<8x128xf32>, i32 -> vector<8x128xf32>
    %c124_i32 = arith.constant 124 : i32
    %80 = tpu.dynamic_rotate %74 by %c124_i32 dim 1 : vector<8x128xf32>, i32 -> vector<8x128xf32>
    %cst_41 = arith.constant 0.000000e+00 : f32
    %81 = vector.broadcast %cst_41 : f32 to vector<8x128xf32>
    %82 = arith.subf %81, %80 : vector<8x128xf32>
    %83 = arith.select %28, %79, %82 : vector<8x128xi1>, vector<8x128xf32>
    %84 = vector.broadcast %76 : vector<8x1xf32> to vector<8x128xf32>
    %85 = arith.mulf %84, %83 : vector<8x128xf32>
    %86 = arith.addf %78, %85 : vector<8x128xf32>
    %c0_42 = arith.constant 0 : index
    %c12 = arith.constant 12 : index
    %87 = vector.load %arg4[%c0_42, %c12] : memref<8x128xf32, #tpu.memory_space<vmem>>, vector<8x1xf32>
    %c0_43 = arith.constant 0 : index
    %c12_44 = arith.constant 12 : index
    %88 = vector.load %arg5[%c0_43, %c12_44] : memref<8x128xf32, #tpu.memory_space<vmem>>, vector<8x1xf32>
    %89 = vector.broadcast %87 : vector<8x1xf32> to vector<8x128xf32>
    %90 = arith.mulf %89, %86 : vector<8x128xf32>
    %c8_i32 = arith.constant 8 : i32
    %91 = tpu.dynamic_rotate %86 by %c8_i32 dim 1 : vector<8x128xf32>, i32 -> vector<8x128xf32>
    %c120_i32 = arith.constant 120 : i32
    %92 = tpu.dynamic_rotate %86 by %c120_i32 dim 1 : vector<8x128xf32>, i32 -> vector<8x128xf32>
    %cst_45 = arith.constant 0.000000e+00 : f32
    %93 = vector.broadcast %cst_45 : f32 to vector<8x128xf32>
    %94 = arith.subf %93, %92 : vector<8x128xf32>
    %95 = arith.select %34, %91, %94 : vector<8x128xi1>, vector<8x128xf32>
    %96 = vector.broadcast %88 : vector<8x1xf32> to vector<8x128xf32>
    %97 = arith.mulf %96, %95 : vector<8x128xf32>
    %98 = arith.addf %90, %97 : vector<8x128xf32>
    %cst_46 = arith.constant dense<0.000000e+00> : vector<8x128xf32>
    %99 = tpu.matmul %98, %9, %cst_46 {dimension_numbers = #tpu.dot_dimension_numbers<[1], [0], [0], [1], [0, 0, 1, 1], [], []>} : vector<8x128xf32>, vector<128x128xf32>, vector<8x128xf32> -> vector<8x128xf32>
    %c0_47 = arith.constant 0 : index
    %c1 = arith.constant 1 : index
    %100 = vector.load %arg4[%c0_47, %c1] : memref<8x128xf32, #tpu.memory_space<vmem>>, vector<8x1xf32>
    %c0_48 = arith.constant 0 : index
    %c1_49 = arith.constant 1 : index
    %101 = vector.load %arg5[%c0_48, %c1_49] : memref<8x128xf32, #tpu.memory_space<vmem>>, vector<8x1xf32>
    %102 = vector.broadcast %100 : vector<8x1xf32> to vector<8x128xf32>
    %103 = arith.mulf %102, %99 : vector<8x128xf32>
    %c1_i32_50 = arith.constant 1 : i32
    %104 = tpu.dynamic_rotate %99 by %c1_i32_50 dim 1 : vector<8x128xf32>, i32 -> vector<8x128xf32>
    %c127_i32_51 = arith.constant 127 : i32
    %105 = tpu.dynamic_rotate %99 by %c127_i32_51 dim 1 : vector<8x128xf32>, i32 -> vector<8x128xf32>
    %cst_52 = arith.constant 0.000000e+00 : f32
    %106 = vector.broadcast %cst_52 : f32 to vector<8x128xf32>
    %107 = arith.subf %106, %105 : vector<8x128xf32>
    %108 = arith.select %16, %104, %107 : vector<8x128xi1>, vector<8x128xf32>
    %109 = vector.broadcast %101 : vector<8x1xf32> to vector<8x128xf32>
    %110 = arith.mulf %109, %108 : vector<8x128xf32>
    %111 = arith.addf %103, %110 : vector<8x128xf32>
    %c0_53 = arith.constant 0 : index
    %c5 = arith.constant 5 : index
    %112 = vector.load %arg4[%c0_53, %c5] : memref<8x128xf32, #tpu.memory_space<vmem>>, vector<8x1xf32>
    %c0_54 = arith.constant 0 : index
    %c5_55 = arith.constant 5 : index
    %113 = vector.load %arg5[%c0_54, %c5_55] : memref<8x128xf32, #tpu.memory_space<vmem>>, vector<8x1xf32>
    %114 = vector.broadcast %112 : vector<8x1xf32> to vector<8x128xf32>
    %115 = arith.mulf %114, %111 : vector<8x128xf32>
    %c2_i32_56 = arith.constant 2 : i32
    %116 = tpu.dynamic_rotate %111 by %c2_i32_56 dim 1 : vector<8x128xf32>, i32 -> vector<8x128xf32>
    %c126_i32_57 = arith.constant 126 : i32
    %117 = tpu.dynamic_rotate %111 by %c126_i32_57 dim 1 : vector<8x128xf32>, i32 -> vector<8x128xf32>
    %cst_58 = arith.constant 0.000000e+00 : f32
    %118 = vector.broadcast %cst_58 : f32 to vector<8x128xf32>
    %119 = arith.subf %118, %117 : vector<8x128xf32>
    %120 = arith.select %22, %116, %119 : vector<8x128xi1>, vector<8x128xf32>
    %121 = vector.broadcast %113 : vector<8x1xf32> to vector<8x128xf32>
    %122 = arith.mulf %121, %120 : vector<8x128xf32>
    %123 = arith.addf %115, %122 : vector<8x128xf32>
    %c0_59 = arith.constant 0 : index
    %c9 = arith.constant 9 : index
    %124 = vector.load %arg4[%c0_59, %c9] : memref<8x128xf32, #tpu.memory_space<vmem>>, vector<8x1xf32>
    %c0_60 = arith.constant 0 : index
    %c9_61 = arith.constant 9 : index
    %125 = vector.load %arg5[%c0_60, %c9_61] : memref<8x128xf32, #tpu.memory_space<vmem>>, vector<8x1xf32>
    %126 = vector.broadcast %124 : vector<8x1xf32> to vector<8x128xf32>
    %127 = arith.mulf %126, %123 : vector<8x128xf32>
    %c4_i32_62 = arith.constant 4 : i32
    %128 = tpu.dynamic_rotate %123 by %c4_i32_62 dim 1 : vector<8x128xf32>, i32 -> vector<8x128xf32>
    %c124_i32_63 = arith.constant 124 : i32
    %129 = tpu.dynamic_rotate %123 by %c124_i32_63 dim 1 : vector<8x128xf32>, i32 -> vector<8x128xf32>
    %cst_64 = arith.constant 0.000000e+00 : f32
    %130 = vector.broadcast %cst_64 : f32 to vector<8x128xf32>
    %131 = arith.subf %130, %129 : vector<8x128xf32>
    %132 = arith.select %28, %128, %131 : vector<8x128xi1>, vector<8x128xf32>
    %133 = vector.broadcast %125 : vector<8x1xf32> to vector<8x128xf32>
    %134 = arith.mulf %133, %132 : vector<8x128xf32>
    %135 = arith.addf %127, %134 : vector<8x128xf32>
    %c0_65 = arith.constant 0 : index
    %c13 = arith.constant 13 : index
    %136 = vector.load %arg4[%c0_65, %c13] : memref<8x128xf32, #tpu.memory_space<vmem>>, vector<8x1xf32>
    %c0_66 = arith.constant 0 : index
    %c13_67 = arith.constant 13 : index
    %137 = vector.load %arg5[%c0_66, %c13_67] : memref<8x128xf32, #tpu.memory_space<vmem>>, vector<8x1xf32>
    %138 = vector.broadcast %136 : vector<8x1xf32> to vector<8x128xf32>
    %139 = arith.mulf %138, %135 : vector<8x128xf32>
    %c8_i32_68 = arith.constant 8 : i32
    %140 = tpu.dynamic_rotate %135 by %c8_i32_68 dim 1 : vector<8x128xf32>, i32 -> vector<8x128xf32>
    %c120_i32_69 = arith.constant 120 : i32
    %141 = tpu.dynamic_rotate %135 by %c120_i32_69 dim 1 : vector<8x128xf32>, i32 -> vector<8x128xf32>
    %cst_70 = arith.constant 0.000000e+00 : f32
    %142 = vector.broadcast %cst_70 : f32 to vector<8x128xf32>
    %143 = arith.subf %142, %141 : vector<8x128xf32>
    %144 = arith.select %34, %140, %143 : vector<8x128xi1>, vector<8x128xf32>
    %145 = vector.broadcast %137 : vector<8x1xf32> to vector<8x128xf32>
    %146 = arith.mulf %145, %144 : vector<8x128xf32>
    %147 = arith.addf %139, %146 : vector<8x128xf32>
    %cst_71 = arith.constant dense<0.000000e+00> : vector<8x128xf32>
    %148 = tpu.matmul %147, %9, %cst_71 {dimension_numbers = #tpu.dot_dimension_numbers<[1], [0], [0], [1], [0, 0, 1, 1], [], []>} : vector<8x128xf32>, vector<128x128xf32>, vector<8x128xf32> -> vector<8x128xf32>
    %c0_72 = arith.constant 0 : index
    %c2 = arith.constant 2 : index
    %149 = vector.load %arg4[%c0_72, %c2] : memref<8x128xf32, #tpu.memory_space<vmem>>, vector<8x1xf32>
    %c0_73 = arith.constant 0 : index
    %c2_74 = arith.constant 2 : index
    %150 = vector.load %arg5[%c0_73, %c2_74] : memref<8x128xf32, #tpu.memory_space<vmem>>, vector<8x1xf32>
    %151 = vector.broadcast %149 : vector<8x1xf32> to vector<8x128xf32>
    %152 = arith.mulf %151, %148 : vector<8x128xf32>
    %c1_i32_75 = arith.constant 1 : i32
    %153 = tpu.dynamic_rotate %148 by %c1_i32_75 dim 1 : vector<8x128xf32>, i32 -> vector<8x128xf32>
    %c127_i32_76 = arith.constant 127 : i32
    %154 = tpu.dynamic_rotate %148 by %c127_i32_76 dim 1 : vector<8x128xf32>, i32 -> vector<8x128xf32>
    %cst_77 = arith.constant 0.000000e+00 : f32
    %155 = vector.broadcast %cst_77 : f32 to vector<8x128xf32>
    %156 = arith.subf %155, %154 : vector<8x128xf32>
    %157 = arith.select %16, %153, %156 : vector<8x128xi1>, vector<8x128xf32>
    %158 = vector.broadcast %150 : vector<8x1xf32> to vector<8x128xf32>
    %159 = arith.mulf %158, %157 : vector<8x128xf32>
    %160 = arith.addf %152, %159 : vector<8x128xf32>
    %c0_78 = arith.constant 0 : index
    %c6 = arith.constant 6 : index
    %161 = vector.load %arg4[%c0_78, %c6] : memref<8x128xf32, #tpu.memory_space<vmem>>, vector<8x1xf32>
    %c0_79 = arith.constant 0 : index
    %c6_80 = arith.constant 6 : index
    %162 = vector.load %arg5[%c0_79, %c6_80] : memref<8x128xf32, #tpu.memory_space<vmem>>, vector<8x1xf32>
    %163 = vector.broadcast %161 : vector<8x1xf32> to vector<8x128xf32>
    %164 = arith.mulf %163, %160 : vector<8x128xf32>
    %c2_i32_81 = arith.constant 2 : i32
    %165 = tpu.dynamic_rotate %160 by %c2_i32_81 dim 1 : vector<8x128xf32>, i32 -> vector<8x128xf32>
    %c126_i32_82 = arith.constant 126 : i32
    %166 = tpu.dynamic_rotate %160 by %c126_i32_82 dim 1 : vector<8x128xf32>, i32 -> vector<8x128xf32>
    %cst_83 = arith.constant 0.000000e+00 : f32
    %167 = vector.broadcast %cst_83 : f32 to vector<8x128xf32>
    %168 = arith.subf %167, %166 : vector<8x128xf32>
    %169 = arith.select %22, %165, %168 : vector<8x128xi1>, vector<8x128xf32>
    %170 = vector.broadcast %162 : vector<8x1xf32> to vector<8x128xf32>
    %171 = arith.mulf %170, %169 : vector<8x128xf32>
    %172 = arith.addf %164, %171 : vector<8x128xf32>
    %c0_84 = arith.constant 0 : index
    %c10 = arith.constant 10 : index
    %173 = vector.load %arg4[%c0_84, %c10] : memref<8x128xf32, #tpu.memory_space<vmem>>, vector<8x1xf32>
    %c0_85 = arith.constant 0 : index
    %c10_86 = arith.constant 10 : index
    %174 = vector.load %arg5[%c0_85, %c10_86] : memref<8x128xf32, #tpu.memory_space<vmem>>, vector<8x1xf32>
    %175 = vector.broadcast %173 : vector<8x1xf32> to vector<8x128xf32>
    %176 = arith.mulf %175, %172 : vector<8x128xf32>
    %c4_i32_87 = arith.constant 4 : i32
    %177 = tpu.dynamic_rotate %172 by %c4_i32_87 dim 1 : vector<8x128xf32>, i32 -> vector<8x128xf32>
    %c124_i32_88 = arith.constant 124 : i32
    %178 = tpu.dynamic_rotate %172 by %c124_i32_88 dim 1 : vector<8x128xf32>, i32 -> vector<8x128xf32>
    %cst_89 = arith.constant 0.000000e+00 : f32
    %179 = vector.broadcast %cst_89 : f32 to vector<8x128xf32>
    %180 = arith.subf %179, %178 : vector<8x128xf32>
    %181 = arith.select %28, %177, %180 : vector<8x128xi1>, vector<8x128xf32>
    %182 = vector.broadcast %174 : vector<8x1xf32> to vector<8x128xf32>
    %183 = arith.mulf %182, %181 : vector<8x128xf32>
    %184 = arith.addf %176, %183 : vector<8x128xf32>
    %c0_90 = arith.constant 0 : index
    %c14 = arith.constant 14 : index
    %185 = vector.load %arg4[%c0_90, %c14] : memref<8x128xf32, #tpu.memory_space<vmem>>, vector<8x1xf32>
    %c0_91 = arith.constant 0 : index
    %c14_92 = arith.constant 14 : index
    %186 = vector.load %arg5[%c0_91, %c14_92] : memref<8x128xf32, #tpu.memory_space<vmem>>, vector<8x1xf32>
    %187 = vector.broadcast %185 : vector<8x1xf32> to vector<8x128xf32>
    %188 = arith.mulf %187, %184 : vector<8x128xf32>
    %c8_i32_93 = arith.constant 8 : i32
    %189 = tpu.dynamic_rotate %184 by %c8_i32_93 dim 1 : vector<8x128xf32>, i32 -> vector<8x128xf32>
    %c120_i32_94 = arith.constant 120 : i32
    %190 = tpu.dynamic_rotate %184 by %c120_i32_94 dim 1 : vector<8x128xf32>, i32 -> vector<8x128xf32>
    %cst_95 = arith.constant 0.000000e+00 : f32
    %191 = vector.broadcast %cst_95 : f32 to vector<8x128xf32>
    %192 = arith.subf %191, %190 : vector<8x128xf32>
    %193 = arith.select %34, %189, %192 : vector<8x128xi1>, vector<8x128xf32>
    %194 = vector.broadcast %186 : vector<8x1xf32> to vector<8x128xf32>
    %195 = arith.mulf %194, %193 : vector<8x128xf32>
    %196 = arith.addf %188, %195 : vector<8x128xf32>
    %cst_96 = arith.constant dense<0.000000e+00> : vector<8x128xf32>
    %197 = tpu.matmul %196, %9, %cst_96 {dimension_numbers = #tpu.dot_dimension_numbers<[1], [0], [0], [1], [0, 0, 1, 1], [], []>} : vector<8x128xf32>, vector<128x128xf32>, vector<8x128xf32> -> vector<8x128xf32>
    %c0_97 = arith.constant 0 : index
    %c3 = arith.constant 3 : index
    %198 = vector.load %arg4[%c0_97, %c3] : memref<8x128xf32, #tpu.memory_space<vmem>>, vector<8x1xf32>
    %c0_98 = arith.constant 0 : index
    %c3_99 = arith.constant 3 : index
    %199 = vector.load %arg5[%c0_98, %c3_99] : memref<8x128xf32, #tpu.memory_space<vmem>>, vector<8x1xf32>
    %200 = vector.broadcast %198 : vector<8x1xf32> to vector<8x128xf32>
    %201 = arith.mulf %200, %197 : vector<8x128xf32>
    %c1_i32_100 = arith.constant 1 : i32
    %202 = tpu.dynamic_rotate %197 by %c1_i32_100 dim 1 : vector<8x128xf32>, i32 -> vector<8x128xf32>
    %c127_i32_101 = arith.constant 127 : i32
    %203 = tpu.dynamic_rotate %197 by %c127_i32_101 dim 1 : vector<8x128xf32>, i32 -> vector<8x128xf32>
    %cst_102 = arith.constant 0.000000e+00 : f32
    %204 = vector.broadcast %cst_102 : f32 to vector<8x128xf32>
    %205 = arith.subf %204, %203 : vector<8x128xf32>
    %206 = arith.select %16, %202, %205 : vector<8x128xi1>, vector<8x128xf32>
    %207 = vector.broadcast %199 : vector<8x1xf32> to vector<8x128xf32>
    %208 = arith.mulf %207, %206 : vector<8x128xf32>
    %209 = arith.addf %201, %208 : vector<8x128xf32>
    %c0_103 = arith.constant 0 : index
    %c7 = arith.constant 7 : index
    %210 = vector.load %arg4[%c0_103, %c7] : memref<8x128xf32, #tpu.memory_space<vmem>>, vector<8x1xf32>
    %c0_104 = arith.constant 0 : index
    %c7_105 = arith.constant 7 : index
    %211 = vector.load %arg5[%c0_104, %c7_105] : memref<8x128xf32, #tpu.memory_space<vmem>>, vector<8x1xf32>
    %212 = vector.broadcast %210 : vector<8x1xf32> to vector<8x128xf32>
    %213 = arith.mulf %212, %209 : vector<8x128xf32>
    %c2_i32_106 = arith.constant 2 : i32
    %214 = tpu.dynamic_rotate %209 by %c2_i32_106 dim 1 : vector<8x128xf32>, i32 -> vector<8x128xf32>
    %c126_i32_107 = arith.constant 126 : i32
    %215 = tpu.dynamic_rotate %209 by %c126_i32_107 dim 1 : vector<8x128xf32>, i32 -> vector<8x128xf32>
    %cst_108 = arith.constant 0.000000e+00 : f32
    %216 = vector.broadcast %cst_108 : f32 to vector<8x128xf32>
    %217 = arith.subf %216, %215 : vector<8x128xf32>
    %218 = arith.select %22, %214, %217 : vector<8x128xi1>, vector<8x128xf32>
    %219 = vector.broadcast %211 : vector<8x1xf32> to vector<8x128xf32>
    %220 = arith.mulf %219, %218 : vector<8x128xf32>
    %221 = arith.addf %213, %220 : vector<8x128xf32>
    %c0_109 = arith.constant 0 : index
    %c11 = arith.constant 11 : index
    %222 = vector.load %arg4[%c0_109, %c11] : memref<8x128xf32, #tpu.memory_space<vmem>>, vector<8x1xf32>
    %c0_110 = arith.constant 0 : index
    %c11_111 = arith.constant 11 : index
    %223 = vector.load %arg5[%c0_110, %c11_111] : memref<8x128xf32, #tpu.memory_space<vmem>>, vector<8x1xf32>
    %224 = vector.broadcast %222 : vector<8x1xf32> to vector<8x128xf32>
    %225 = arith.mulf %224, %221 : vector<8x128xf32>
    %c4_i32_112 = arith.constant 4 : i32
    %226 = tpu.dynamic_rotate %221 by %c4_i32_112 dim 1 : vector<8x128xf32>, i32 -> vector<8x128xf32>
    %c124_i32_113 = arith.constant 124 : i32
    %227 = tpu.dynamic_rotate %221 by %c124_i32_113 dim 1 : vector<8x128xf32>, i32 -> vector<8x128xf32>
    %cst_114 = arith.constant 0.000000e+00 : f32
    %228 = vector.broadcast %cst_114 : f32 to vector<8x128xf32>
    %229 = arith.subf %228, %227 : vector<8x128xf32>
    %230 = arith.select %28, %226, %229 : vector<8x128xi1>, vector<8x128xf32>
    %231 = vector.broadcast %223 : vector<8x1xf32> to vector<8x128xf32>
    %232 = arith.mulf %231, %230 : vector<8x128xf32>
    %233 = arith.addf %225, %232 : vector<8x128xf32>
    %c0_115 = arith.constant 0 : index
    %c15 = arith.constant 15 : index
    %234 = vector.load %arg4[%c0_115, %c15] : memref<8x128xf32, #tpu.memory_space<vmem>>, vector<8x1xf32>
    %c0_116 = arith.constant 0 : index
    %c15_117 = arith.constant 15 : index
    %235 = vector.load %arg5[%c0_116, %c15_117] : memref<8x128xf32, #tpu.memory_space<vmem>>, vector<8x1xf32>
    %236 = vector.broadcast %234 : vector<8x1xf32> to vector<8x128xf32>
    %237 = arith.mulf %236, %233 : vector<8x128xf32>
    %c8_i32_118 = arith.constant 8 : i32
    %238 = tpu.dynamic_rotate %233 by %c8_i32_118 dim 1 : vector<8x128xf32>, i32 -> vector<8x128xf32>
    %c120_i32_119 = arith.constant 120 : i32
    %239 = tpu.dynamic_rotate %233 by %c120_i32_119 dim 1 : vector<8x128xf32>, i32 -> vector<8x128xf32>
    %cst_120 = arith.constant 0.000000e+00 : f32
    %240 = vector.broadcast %cst_120 : f32 to vector<8x128xf32>
    %241 = arith.subf %240, %239 : vector<8x128xf32>
    %242 = arith.select %34, %238, %241 : vector<8x128xi1>, vector<8x128xf32>
    %243 = vector.broadcast %235 : vector<8x1xf32> to vector<8x128xf32>
    %244 = arith.mulf %243, %242 : vector<8x128xf32>
    %245 = arith.addf %237, %244 : vector<8x128xf32>
    %246 = arith.mulf %245, %245 : vector<8x128xf32>
    %247 = vector.broadcast %8 : vector<1x128xf32> to vector<8x128xf32>
    %248 = arith.mulf %246, %247 : vector<8x128xf32>
    %cst_121 = arith.constant dense<0.000000e+00> : vector<8xf32>
    %249 = vector.multi_reduction <add>, %248, %cst_121 [1] : vector<8x128xf32> to vector<8xf32>
    %250 = vector.shape_cast %249 : vector<8xf32> to vector<8x1xf32>
    %251 = vector.broadcast %250 : vector<8x1xf32> to vector<8x128xf32>
    %252 = vector.broadcast %4 : vector<1x128xf32> to vector<8x128xf32>
    %253 = arith.mulf %251, %252 : vector<8x128xf32>
    %254 = vector.broadcast %5 : vector<1x128xf32> to vector<8x128xf32>
    %255 = arith.addf %253, %254 : vector<8x128xf32>
    %256 = vector.broadcast %250 : vector<8x1xf32> to vector<8x128xf32>
    %257 = vector.broadcast %6 : vector<1x128xf32> to vector<8x128xf32>
    %258 = arith.mulf %256, %257 : vector<8x128xf32>
    %259 = vector.broadcast %7 : vector<1x128xf32> to vector<8x128xf32>
    %260 = arith.addf %258, %259 : vector<8x128xf32>
    %c10_i32 = arith.constant 10 : i32
    %261 = vector.broadcast %c10_i32 : i32 to vector<8x128xi32>
    %262 = arith.cmpi slt, %10, %261 : vector<8x128xi32>
    %cst_122 = arith.constant -1.000000e+30 : f32
    %263 = vector.broadcast %cst_122 : f32 to vector<8x128xf32>
    %264 = arith.select %262, %255, %263 : vector<8x128xi1>, vector<8x128xf32>
    %cst_123 = arith.constant dense<0xFF800000> : vector<8xf32>
    %265 = vector.multi_reduction <maximumf>, %264, %cst_123 [1] : vector<8x128xf32> to vector<8xf32>
    %266 = vector.shape_cast %265 : vector<8xf32> to vector<8x1xf32>
    %267 = vector.broadcast %266 : vector<8x1xf32> to vector<8x128xf32>
    %268 = arith.subf %264, %267 : vector<8x128xf32>
    %269 = math.exp %268 : vector<8x128xf32>
    %cst_124 = arith.constant 0.000000e+00 : f32
    %270 = vector.broadcast %cst_124 : f32 to vector<8x128xf32>
    %271 = arith.select %262, %269, %270 : vector<8x128xi1>, vector<8x128xf32>
    %cst_125 = arith.constant dense<0.000000e+00> : vector<8xf32>
    %272 = vector.multi_reduction <add>, %271, %cst_125 [1] : vector<8x128xf32> to vector<8xf32>
    %273 = vector.shape_cast %272 : vector<8xf32> to vector<8x1xf32>
    %274 = vector.broadcast %273 : vector<8x1xf32> to vector<8x128xf32>
    %275 = arith.divf %271, %274 : vector<8x128xf32>
    %276 = arith.addf %275, %260 : vector<8x128xf32>
    %c0_126 = arith.constant 0 : index
    %c0_127 = arith.constant 0 : index
    %277 = vector.load %arg3[%c0_126, %c0_127] : memref<8x128xf32, #tpu.memory_space<vmem>>, vector<8x128xf32>
    tpu.vector_store %arg3[%c0_126, %c0_127], %276 {strides = array<i32>} : memref<8x128xf32, #tpu.memory_space<vmem>>, vector<8x128xf32>,
    return
  }
  func.func @transform_0(%arg0: i32) -> (i32, i32) {
    %c0_i32 = arith.constant 0 : i32
    %c0_i32_0 = arith.constant 0 : i32
    return %arg0, %c0_i32 : i32, i32
  }
  func.func @transform_1(%arg0: i32) -> (i32, i32) {
    %c0_i32 = arith.constant 0 : i32
    %c0_i32_0 = arith.constant 0 : i32
    %c0_i32_1 = arith.constant 0 : i32
    return %c0_i32, %c0_i32_0 : i32, i32
  }
  func.func @transform_2(%arg0: i32) -> (i32, i32) {
    %c0_i32 = arith.constant 0 : i32
    %c0_i32_0 = arith.constant 0 : i32
    return %arg0, %c0_i32 : i32, i32
  }
}

</mosaic_0001>

<llo_original>
// kernel: tpu_custom_call.1
$region0: #{tpu_custom_call.1}
  #allocation0 [shape = 'u32[]', space=smem, size = 0x4, offset = 0x4, fixed_abs, tag = 'smem constant byte address 0x4 - core index']
  #allocation1 [shape = 'u32[144,128]{1,0:T(1,128)}', space=vmem, size = 0x12000, scoped, tag = 'internal scratch']
  #allocation2 [shape = 'f32[8,128]{1,0:T(8,128)}', space=vmem, size = 0x1000, scoped, tag = 'scratch operand']
  #allocation3 [shape = 'f32[8,128]{1,0:T(8,128)}', space=vmem, size = 0x1000, scoped, tag = 'scratch operand']
  %s0 = inlined_call_operand.hbm [shape: f32[16,16], index: 0, kind: input, shape index: {}]
  %s1 = inlined_call_operand.hbm [shape: f32[200,128], index: 1, kind: input, shape index: {}]
  %s2 = inlined_call_operand.hbm [shape: f32[16,128], index: 2, kind: output, shape index: {}]
  %s3 = sld [smem:[#allocation0]]
  $region49: #{tpu_custom_call.1} parent=0
    _
  %s5 = ssub.s32 1, %s3
  %s6 = scalar_select 0, %s5, %s3
  $region1: #{tpu_custom_call.1} parent=0
    #allocation4 [shape = 'u8[8192]{0}', space=vmem, size = 0x2000, scoped, tag = 'input window, operand 0']
    #allocation5 [shape = 's32[2]{0}', space=sflag, size = 0x8, scoped, tag = 'scoped memory for tpu_custom_call.1']
    #allocation6 [shape = 's32[2]{0}', space=sflag, size = 0x8, scoped, tag = 'scoped memory for tpu_custom_call.1']
    #allocation7 [shape = 'u8[102400]{0}', space=vmem, size = 0x19000, scoped, tag = 'input window, operand 1, single buffered']
    #allocation8 [shape = 's32[1]{0}', space=sflag, size = 0x4, scoped, tag = 'scoped memory for tpu_custom_call.1']
    #allocation9 [shape = 'u8[8192]{0}', space=vmem, size = 0x2000, scoped, tag = 'output window, operand 0']
    %7 = vsyncpa [#allocation5], 0
    %s8 = scalar_lea.sflag [#allocation5], 1
    %9 = vsyncpa %s8, 0
    %10 = vsyncpa [#allocation8], 0
    %11 = vsyncpa [#allocation6], 0
    %s12 = scalar_lea.sflag [#allocation6], 1
    %13 = vsyncpa %s12, 0
    loop: start=0, step=1, limit=4
    $region2: #{tpu_custom_call.1} parent=1 // loop_pre_header
      _
    $region3: #{tpu_custom_call.1} parent=1 // loop_header
      %s15 = sphi 0, %s19
      %p16 = scmp.ge.s32.totalorder %s15, 4
      %s25 = sphi 0, %s27
      %s28 = sphi 0, %s25
      %s29 = sphi 0, %s28
      %s45 = sphi 0, %s29
      %s49 = sphi 0, %s49
      %s51 = sphi 0, %s49
      %s52 = sphi 0, %s51
      %s66 = sphi 0, %s52
      %s72 = sphi 0, %s74
      %s75 = sphi 0, %s72
      %s76 = sphi 0, %s75
      %s92 = sphi 0, %s76
    $region4: #{tpu_custom_call.1} parent=1 // loop_header_branch
      %18 = sbr.rel (%p16) target = $region8
    $region5: #{tpu_custom_call.1} parent=1 // loop_body
      %s20 = ssub.s32 %s15, 1
      %s21 = ssub.s32 %s15, 2
      %s22 = sadd.s32 %s15, 1
      %s23 = ssub.s32 %s15, %s22
      %p24 = scmp.eq.s32.totalorder %s23, 0
      %s26 = sadd.s32 %s25, 1
      %s27 = scalar_select %p24, %s25, %s26
      %p30 = pneg %p24
      %p31 = scmp.eq.s32.totalorder %s15, 1
      %p32 = por %p30, %p31
      %p33 = scmp.ne.s32.totalorder %s25, %s28
      %p34 = scmp.eq.s32.totalorder %s15, 0
      %p35 = por %p33, %p34
      %p36 = scmp.ne.s32.totalorder %s25, %s28
      %p37 = scmp.eq.s32.totalorder %s20, 1
      %p38 = por %p36, %p37
      %p39 = scmp.ne.s32.totalorder %s28, %s29
      %p40 = scmp.eq.s32.totalorder %s20, 0
      %p41 = por %p39, %p40
      %p42 = scmp.ne.s32.totalorder %s28, %s29
      %p43 = scmp.eq.s32.totalorder %s21, 1
      %p44 = por %p42, %p43
      %p46 = scmp.ne.s32.totalorder %s29, %s45
      %p47 = scmp.eq.s32.totalorder %s21, 0
      %p48 = por %p46, %p47
      %s50 = sadd.s32 %s49, 1
      %p53 = scmp.eq.s32.totalorder %s15, 1
      %p54 = scmp.ne.s32.totalorder %s49, %s51
      %p55 = scmp.eq.s32.totalorder %s15, 0
      %p56 = por %p54, %p55
      %p57 = scmp.ne.s32.totalorder %s49, %s51
      %p58 = scmp.eq.s32.totalorder %s20, 1
      %p59 = por %p57, %p58
      %p60 = scmp.ne.s32.totalorder %s51, %s52
      %p61 = scmp.eq.s32.totalorder %s20, 0
      %p62 = por %p60, %p61
      %p63 = scmp.ne.s32.totalorder %s51, %s52
      %p64 = scmp.eq.s32.totalorder %s21, 1
      %p65 = por %p63, %p64
      %p67 = scmp.ne.s32.totalorder %s52, %s66
      %p68 = scmp.eq.s32.totalorder %s21, 0
      %p69 = por %p67, %p68
      %s70 = ssub.s32 %s15, %s22
      %p71 = scmp.eq.s32.totalorder %s70, 0
      %s73 = sadd.s32 %s72, 1
      %s74 = scalar_select %p71, %s72, %s73
      %p77 = pneg %p71
      %p78 = scmp.eq.s32.totalorder %s15, 1
      %p79 = por %p77, %p78
      %p80 = scmp.ne.s32.totalorder %s72, %s75
      %p81 = scmp.eq.s32.totalorder %s15, 0
      %p82 = por %p80, %p81
      %p83 = scmp.ne.s32.totalorder %s72, %s75
      %p84 = scmp.eq.s32.totalorder %s20, 1
      %p85 = por %p83, %p84
      %p86 = scmp.ne.s32.totalorder %s75, %s76
      %p87 = scmp.eq.s32.totalorder %s20, 0
      %p88 = por %p86, %p87
      %p89 = scmp.ne.s32.totalorder %s75, %s76
      %p90 = scmp.eq.s32.totalorder %s21, 1
      %p91 = por %p89, %p90
      %p93 = scmp.ne.s32.totalorder %s76, %s92
      %p94 = scmp.eq.s32.totalorder %s21, 0
      %p95 = por %p93, %p94
      %p96 = scmp.le.s32.totalorder 1, %s15
      %p97 = scmp.lt.s32.totalorder %s15, 3
      %p98 = pnand %p96, %p97
      %p99 = pneg %p98
      // Predicated region
      $region9: #{tpu_custom_call.1} parent=5 // pred_check
        _
      $region10: #{tpu_custom_call.1} parent=5 // pred_check_branch
        %101 = sbr.rel (%p98) target = $region12
      $region11: #{tpu_custom_call.1} parent=5 // pred_region
        %s102 = ssub.s32 %s15, 1
        // Predicated region
        $region13: #{tpu_custom_call.1} parent=11 // pred_check
          %p103 = pneg %p62
        $region14: #{tpu_custom_call.1} parent=11 // pred_check_branch
          %105 = sbr.rel (%p103) target = $region16
        $region15: #{tpu_custom_call.1} parent=11 // pred_region
          %s107 = ssub.s32 3200, 3200
          %108 = vsyncadd [#allocation8], %s107
          %s109 = sshll.u32 [#allocation7], 4
          %s110 = int_to_ptr.vmem [resolvable:$true] %s109
          %115 = dma.hbm_to_vmem [thread:$0]  %s1, 3200, %s110, [#allocation8], 128, 128, 8
        $region16: #{tpu_custom_call.1} parent=11 // pred_fallthru
          _
      $region12: #{tpu_custom_call.1} parent=5 // pred_fallthru
        _
      %p116 = scmp.lt.s32.totalorder %s15, 2
      // Predicated region
      $region17: #{tpu_custom_call.1} parent=5 // pred_check
        %p117 = pneg %p116
      $region18: #{tpu_custom_call.1} parent=5 // pred_check_branch
        %119 = sbr.rel (%p117) target = $region20
      $region19: #{tpu_custom_call.1} parent=5 // pred_region
        // Predicated region
        $region21: #{tpu_custom_call.1} parent=19 // pred_check
          %p120 = pneg %p35
        $region22: #{tpu_custom_call.1} parent=19 // pred_check_branch
          %122 = sbr.rel (%p120) target = $region24
        $region23: #{tpu_custom_call.1} parent=19 // pred_region
          %s123 = sand.u32 %s25, 1
          %s124 = scalar_lea.sflag [#allocation5], %s123
          %s125 = sand.u32 %s25, 1
          %s126 = smul.addr %s125, 8
          %s127 = scalar_lea.vmem [#allocation4], %s126
          %s129 = ssub.s32 128, 128
          %130 = vsyncadd %s124, %s129
          %s131 = smul.addr %s15, 128
          %s132 = scalar_lea.hbm %s0, %s131
          %s134 = sshll.u32 %s127, 4
          %s135 = int_to_ptr.vmem [resolvable:$true] %s134
          %137 = dma.hbm_to_vmem [thread:$0]  %s132, 128, %s135, %s124
        $region24: #{tpu_custom_call.1} parent=19 // pred_fallthru
          _
      $region20: #{tpu_custom_call.1} parent=5 // pred_fallthru
        _
      %p138 = scmp.le.s32.totalorder 1, %s15
      %p139 = scmp.lt.s32.totalorder %s15, 3
      %p140 = pnand %p138, %p139
      %p141 = pneg %p140
      // Predicated region
      $region25: #{tpu_custom_call.1} parent=5 // pred_check
        _
      $region26: #{tpu_custom_call.1} parent=5 // pred_check_branch
        %143 = sbr.rel (%p140) target = $region28
      $region27: #{tpu_custom_call.1} parent=5 // pred_region
        %s144 = ssub.s32 %s15, 1
        %s145 = sand.u32 %s28, 1
        %s146 = scalar_lea.sflag [#allocation5], %s145
        %s147 = sand.u32 %s28, 1
        %s148 = smul.addr %s147, 8
        %s149 = scalar_lea.vmem [#allocation4], %s148
        // Predicated region
        $region29: #{tpu_custom_call.1} parent=27 // pred_check
          %p150 = pneg %p41
        $region30: #{tpu_custom_call.1} parent=27 // pred_check_branch
          %152 = sbr.rel (%p150) target = $region32
        $region31: #{tpu_custom_call.1} parent=27 // pred_region
          %153 = dma.done %s146, 128
        $region32: #{tpu_custom_call.1} parent=27 // pred_fallthru
          _
        // Predicated region
        $region33: #{tpu_custom_call.1} parent=27 // pred_check
          %p154 = pneg %p62
        $region34: #{tpu_custom_call.1} parent=27 // pred_check_branch
          %156 = sbr.rel (%p154) target = $region36
        $region35: #{tpu_custom_call.1} parent=27 // pred_region
          %157 = dma.done [#allocation8], 3200
        $region36: #{tpu_custom_call.1} parent=27 // pred_fallthru
          _
        %s158 = sand.u32 %s28, 1
        %s159 = scalar_lea.sflag [#allocation5], %s158
        %s160 = sand.u32 %s28, 1
        %s161 = smul.addr %s160, 8
        %s162 = scalar_lea.vmem [#allocation4], %s161
        %p163 = pneg %p41
        %p164 = pneg %p38
        %p165 = pneg %p62
        %p166 = pneg %p59
        %p167 = pneg %p88
        %p168 = pneg %p85
        %s169 = sand.u32 %s75, 1
        %s170 = scalar_lea.sflag [#allocation6], %s169
        %s171 = sand.u32 %s75, 1
        %s172 = smul.addr %s171, 8
        %s173 = scalar_lea.vmem [#allocation9], %s172
        %v174 = vld [vmem:[%s149] sm:$0xff]
        %v175 = vld [vmem:[#allocation7] sm:$0xff]
        %v176 = vld [vmem:[#allocation7 + $0x8] sm:$0xff]
        %v177 = vld [vmem:[#allocation7 + $0x10] sm:$0x1]
        %v178 = vld [vmem:[#allocation7 + $0x18] sm:$0x1]
        %v179 = vld [vmem:[#allocation7 + $0x20] sm:$0x1]
        %v180 = vld [vmem:[#allocation7 + $0x28] sm:$0x1]
        %v181 = vld [vmem:[#allocation7 + $0x30] sm:$0x1]
        %v182 = vld [vmem:[#allocation7 + $0x38] sm:$0x1]
        %v183 = vld [vmem:[#allocation7 + $0x40] sm:$0x1]
        %v184 = vld [vmem:[#allocation7 + $0x48] sm:$0xff]
        %v185 = vld [vmem:[#allocation7 + $0x50] sm:$0xff]
        %v186 = vld [vmem:[#allocation7 + $0x58] sm:$0xff]
        %v187 = vld [vmem:[#allocation7 + $0x60] sm:$0xff]
        %v188 = vld [vmem:[#allocation7 + $0x68] sm:$0xff]
        %v189 = vld [vmem:[#allocation7 + $0x70] sm:$0xff]
        %v190 = vld [vmem:[#allocation7 + $0x78] sm:$0xff]
        %v191 = vld [vmem:[#allocation7 + $0x80] sm:$0xff]
        %v192 = vld [vmem:[#allocation7 + $0x88] sm:$0xff]
        %v193 = vld [vmem:[#allocation7 + $0x90] sm:$0xff]
        %v194 = vld [vmem:[#allocation7 + $0x98] sm:$0xff]
        %v195 = vld [vmem:[#allocation7 + $0xa0] sm:$0xff]
        %v196 = vld [vmem:[#allocation7 + $0xa8] sm:$0xff]
        %v197 = vld [vmem:[#allocation7 + $0xb0] sm:$0xff]
        %v198 = vld [vmem:[#allocation7 + $0xb8] sm:$0xff]
        %v199 = vld [vmem:[#allocation7 + $0xc0] sm:$0xff]
        %v200 = vlaneseq
        %v201 = vand.u32 %v200, 127
        %v202 = vand.u32 %v201, 1
        %vm203 = vcmp.eq.s32.totalorder %v202, 1
        %v204 = vshra.s32 %v201, 1
        %v205 = vand.u32 %v204, 1
        %vm206 = vcmp.eq.s32.totalorder %v205, 1
        %v207 = vshra.s32 %v201, 2
        %v208 = vand.u32 %v207, 1
        %vm209 = vcmp.eq.s32.totalorder %v208, 1
        %v210 = vshra.s32 %v201, 3
        %v211 = vand.u32 %v210, 1
        %vm212 = vcmp.eq.s32.totalorder %v211, 1
        %v213 = vlaneseq
        %v214 = vshrl.u32 %v213, 7
        %v215 = vsub.s32 0, %v214
        %v216 = vrot.slane %v177, %v215
        %vm217 = vcmask 130048
        %v219 = vsel %vm217, %v174, 0
        %221 = vmatprep.subr.mxu0 0.0
        %222 = vmatpush1.msra.mxu0 0.0
        %223 = vmatprep.subr.mxu0 0.0
        %224 = vmatpush1.msra.mxu0 0.0
        %225 = vmatprep.subr.mxu0 0.0
        %226 = vmatpush1.msra.mxu0 0.0
        %227 = vmatprep.subr.mxu0 0.0
        %228 = vmatpush1.msra.mxu0 0.0
        %229 = vmatprep.subr.mxu0 0.0
        %230 = vmatpush1.msra.mxu0 0.0
        %231 = vmatprep.subr.mxu0 0.0
        %232 = vmatpush1.msra.mxu0 0.0
        %233 = vmatprep.subr.mxu0 0.0
        %234 = vmatpush1.msra.mxu0 0.0
        %235 = vmatprep.subr.mxu0 0.0
        %236 = vmatpush1.msra.mxu0 0.0
        %237 = vmatprep.subr.mxu0 0.0
        %238 = vmatpush1.msra.mxu0 0.0
        %239 = vmatprep.subr.mxu0 0.0
        %240 = vmatpush1.msra.mxu0 0.0
        %241 = vmatprep.subr.mxu0 0.0
        %242 = vmatpush1.msra.mxu0 0.0
        %243 = vmatprep.subr.mxu0 0.0
        %244 = vmatpush1.msra.mxu0 0.0
        %245 = vmatprep.subr.mxu0 0.0
        %246 = vmatpush1.msra.mxu0 0.0
        %247 = vmatprep.subr.mxu0 0.0
        %248 = vmatpush1.msra.mxu0 0.0
        %249 = vmatprep.subr.mxu0 0.0
        %250 = vmatpush1.msra.mxu0 %v176
        %251 = vmatprep.subr.mxu0 0.0
        %252 = vmatpush1.msra.mxu0 %v175
        %253 = vmatprep.subr.mxu0 0.0
        %254 = vmatpush2.msra.mxu0 0.0
        %255 = vmatprep.subr.mxu0 0.0
        %256 = vmatpush2.msra.mxu0 0.0
        %257 = vmatprep.subr.mxu0 0.0
        %258 = vmatpush2.msra.mxu0 0.0
        %259 = vmatprep.subr.mxu0 0.0
        %260 = vmatpush2.msra.mxu0 0.0
        %261 = vmatprep.subr.mxu0 0.0
        %262 = vmatpush2.msra.mxu0 0.0
        %263 = vmatprep.subr.mxu0 0.0
        %264 = vmatpush2.msra.mxu0 0.0
        %265 = vmatprep.subr.mxu0 0.0
        %266 = vmatpush2.msra.mxu0 0.0
        %267 = vmatprep.subr.mxu0 0.0
        %268 = vmatpush2.msra.mxu0 0.0
        %269 = vmatprep.subr.mxu0 0.0
        %270 = vmatpush2.msra.mxu0 0.0
        %271 = vmatprep.subr.mxu0 0.0
        %272 = vmatpush2.msra.mxu0 0.0
        %273 = vmatprep.subr.mxu0 0.0
        %274 = vmatpush2.msra.mxu0 0.0
        %275 = vmatprep.subr.mxu0 0.0
        %276 = vmatpush2.msra.mxu0 0.0
        %277 = vmatprep.subr.mxu0 0.0
        %278 = vmatpush2.msra.mxu0 0.0
        %279 = vmatprep.subr.mxu0 0.0
        %280 = vmatpush2.msra.mxu0 0.0
        %281 = vmatprep.subr.mxu0 0.0
        %282 = vmatpush2.msra.mxu0 0.0
        %283 = vmatprep.subr.mxu0 0.0
        %284 = vmatpush2.msra.mxu0 0.0
        %285 = vmatprep.mubr.f32.mxu0 0.0
        %286 = vmatmul.mubr.f32.gmra.mxu0 %v219
        %v287 = vpop.f32.mrf.mxu0
        %v288 = vadd.f32 %v216, %v287
        %v289 = vpop.f32.mrf.mxu0
        %290 = vdwg.mxu0
        %v291 = vlaneseq
        %v292 = vshrl.u32 %v291, 7
        %v293 = vsub.s32 0, %v292
        %v294 = vrot.slane %v178, %v293
        %v295 = vadd.f32 %v288, %v294
        %v296 = vmul.f32 %v295, 0.5
        %v297 = vand.u32 2147483647, %v296
        %vm298 = vcmp.le.f32.partialorder %v297, 0.7853982
        %vm299 = vcmp.lt.s32.totalorder %v296, 0
        %v300 = vand.u32 %v296, 2139095040
        %v301 = vshrl.u32 %v300, 23
        %v302 = vsub.s32 %v301, 127
        %v303 = vand.u32 2147483647, %v296
        %v304 = vand.u32 %v303, 8388607
        %v305 = vor.u32 %v304, 8388608
        %v306 = vsub.s32 0, %v305
        %v307 = vadd.s32 %v302, 1
        %vm308 = vcmp.gt.s32.totalorder %v307, 0
        %v309 = vsel %vm308, %v307, 0
        %v310 = vshrl.u32 %v309, 5
        %v311 = vand.u32 %v309, 31
        %v312 = vsub.s32 32, %v311
        %v313 = vshrl.u32 683565275, %v312
        %v314 = vshll.u32 683565275, %v311
        %v315 = vshrl.u32 2475754826, %v312
        %v316 = vor.u32 %v314, %v315
        %v317 = vshll.u32 2475754826, %v311
        %v318 = vshrl.u32 2131351028, %v312
        %v319 = vor.u32 %v317, %v318
        %v320 = vshll.u32 2131351028, %v311
        %v321 = vshrl.u32 2102212464, %v312
        %v322 = vor.u32 %v320, %v321
        %v323 = vshll.u32 2102212464, %v311
        %v324 = vshrl.u32 920167782, %v312
        %v325 = vor.u32 %v323, %v324
        %v326 = vshll.u32 920167782, %v311
        %v327 = vshrl.u32 1326507024, %v312
        %v328 = vor.u32 %v326, %v327
        %vm329 = vcmp.lt.s32.totalorder %v310, 1
        %vm330 = vcmp.lt.s32.totalorder %v310, 2
        %vm331 = vcmp.lt.s32.totalorder %v310, 3
        %vm332 = vcmp.lt.s32.totalorder %v310, 4
        %v333 = vsel %vm329, %v313, %v316
        %v334 = vsel %vm332, %v322, 2102212464
        %v335 = vsel %vm331, %v319, %v334
        %v336 = vsel %vm330, %v333, %v335
        %v337 = vsel %vm329, %v316, %v319
        %v338 = vsel %vm332, %v325, 920167782
        %v339 = vsel %vm331, %v322, %v338
        %v340 = vsel %vm330, %v337, %v339
        %v341 = vsel %vm329, %v319, %v322
        %v342 = vsel %vm332, %v328, 1326507024
        %v343 = vsel %vm331, %v325, %v342
        %v344 = vsel %vm330, %v341, %v343
        %v345 = vshll.u32 %v305, 8
        %v346 = vmul.u32.u64.compose %v345, %v344
        %v347 = vextract.low.u32 %v346
        %v348 = vextract.high.u32 %v346
        %v349 = vmul.u32.u64.compose %v345, %v340
        %v350 = vextract.low.u32 %v349
        %v351 = vextract.high.u32 %v349
        %v352 = vmul.u32 %v345, %v336
        %v353 = vadd.s32 %v348, %v350
        %vm354 = vc.u32 %v348, %v350
        %v355 = vadd.s32 %v351, 1
        %v356 = vsel %vm354, %v355, %v351
        %v357 = vadd.s32 %v352, %v356
        %v358 = vadd.s32 %v357, 536870912
        %v359 = vshrl.u32 %v358, 30
        %v360 = vshll.u32 %v359, 30
        %v361 = vsub.s32 %v357, %v360
        %vm362 = vcmp.lt.s32.totalorder %v361, 0
        %v363 = vsub.s32 0, %v361
        %v364 = vsel %vm362, %v363, %v361
        %v365 = vclz %v364
        %v366 = vsub.s32 %v365, 2
        %vm367 = vcmp.gt.s32.totalorder 0, %v366
        %v368 = vsel %vm367, 0, %v366
        %v369 = vsub.s32 32, %v368
        %v370 = vshll.u32 %v361, %v368
        %v371 = vshrl.u32 %v353, %v369
        %v372 = vor.u32 %v370, %v371
        %v373 = vsub.s32 4294967266, %v368
        %v374 = vadd.s32 %v373, 127
        %v375 = vshll.u32 %v374, 23
        %v376 = vor.u32 4788187, %v375
        %v377 = vand.u32 2147483647, %v376
        %v379 = vcvt.s32.f32 %v372
        %v380 = vmul.f32 %v379, %v377
        %v381 = vxor.u32 %v380, 2147483648
        %v382 = vsel %vm299, %v381, %v380
        %v383 = vsub.s32 4, %v359
        %v384 = vsel %vm299, %v383, %v359
        %v385 = vsel %vm298, %v296, %v382
        %v386 = vsel %vm298, 0, %v384
        %v387 = vcosq.f32.pop %v385
        %v388 = vsinq.f32.pop %v385
        %vm389 = vweird.f32 %v296
        %v390 = vand.u32 %v386, 3
        %vm391 = vcmp.lt.s32.totalorder %v390, 2
        %vm392 = vcmp.eq.s32.totalorder %v390, 0
        %v393 = vxor.u32 %v388, 2147483648
        %v394 = vsel %vm392, %v387, %v393
        %vm395 = vcmp.eq.s32.totalorder %v390, 2
        %v396 = vxor.u32 %v387, 2147483648
        %v397 = vsel %vm395, %v396, %v388
        %v398 = vsel %vm391, %v394, %v397
        %v399 = vsel %vm389, nan, %v398
        %400 = vst [vmem:[#allocation2] sm:$0xff] %v399
        %v401 = vand.u32 2147483647, %v296
        %vm402 = vcmp.le.f32.partialorder %v401, 0.7853982
        %vm403 = vcmp.lt.s32.totalorder %v296, 0
        %v404 = vand.u32 %v296, 2139095040
        %v405 = vshrl.u32 %v404, 23
        %v406 = vsub.s32 %v405, 127
        %v407 = vand.u32 2147483647, %v296
        %v408 = vand.u32 %v407, 8388607
        %v409 = vor.u32 %v408, 8388608
        %v410 = vsub.s32 0, %v409
        %v411 = vadd.s32 %v406, 1
        %vm412 = vcmp.gt.s32.totalorder %v411, 0
        %v413 = vsel %vm412, %v411, 0
        %v414 = vshrl.u32 %v413, 5
        %v415 = vand.u32 %v413, 31
        %v416 = vsub.s32 32, %v415
        %v417 = vshrl.u32 683565275, %v416
        %v418 = vshll.u32 683565275, %v415
        %v419 = vshrl.u32 2475754826, %v416
        %v420 = vor.u32 %v418, %v419
        %v421 = vshll.u32 2475754826, %v415
        %v422 = vshrl.u32 2131351028, %v416
        %v423 = vor.u32 %v421, %v422
        %v424 = vshll.u32 2131351028, %v415
        %v425 = vshrl.u32 2102212464, %v416
        %v426 = vor.u32 %v424, %v425
        %v427 = vshll.u32 2102212464, %v415
        %v428 = vshrl.u32 920167782, %v416
        %v429 = vor.u32 %v427, %v428
        %v430 = vshll.u32 920167782, %v415
        %v431 = vshrl.u32 1326507024, %v416
        %v432 = vor.u32 %v430, %v431
        %vm433 = vcmp.lt.s32.totalorder %v414, 1
        %vm434 = vcmp.lt.s32.totalorder %v414, 2
        %vm435 = vcmp.lt.s32.totalorder %v414, 3
        %vm436 = vcmp.lt.s32.totalorder %v414, 4
        %v437 = vsel %vm433, %v417, %v420
        %v438 = vsel %vm436, %v426, 2102212464
        %v439 = vsel %vm435, %v423, %v438
        %v440 = vsel %vm434, %v437, %v439
        %v441 = vsel %vm433, %v420, %v423
        %v442 = vsel %vm436, %v429, 920167782
        %v443 = vsel %vm435, %v426, %v442
        %v444 = vsel %vm434, %v441, %v443
        %v445 = vsel %vm433, %v423, %v426
        %v446 = vsel %vm436, %v432, 1326507024
        %v447 = vsel %vm435, %v429, %v446
        %v448 = vsel %vm434, %v445, %v447
        %v449 = vshll.u32 %v409, 8
        %v450 = vmul.u32.u64.compose %v449, %v448
        %v451 = vextract.low.u32 %v450
        %v452 = vextract.high.u32 %v450
        %v453 = vmul.u32.u64.compose %v449, %v444
        %v454 = vextract.low.u32 %v453
        %v455 = vextract.high.u32 %v453
        %v456 = vmul.u32 %v449, %v440
        %v457 = vadd.s32 %v452, %v454
        %vm458 = vc.u32 %v452, %v454
        %v459 = vadd.s32 %v455, 1
        %v460 = vsel %vm458, %v459, %v455
        %v461 = vadd.s32 %v456, %v460
        %v462 = vadd.s32 %v461, 536870912
        %v463 = vshrl.u32 %v462, 30
        %v464 = vshll.u32 %v463, 30
        %v465 = vsub.s32 %v461, %v464
        %vm466 = vcmp.lt.s32.totalorder %v465, 0
        %v467 = vsub.s32 0, %v465
        %v468 = vsel %vm466, %v467, %v465
        %v469 = vclz %v468
        %v470 = vsub.s32 %v469, 2
        %vm471 = vcmp.gt.s32.totalorder 0, %v470
        %v472 = vsel %vm471, 0, %v470
        %v473 = vsub.s32 32, %v472
        %v474 = vshll.u32 %v465, %v472
        %v475 = vshrl.u32 %v457, %v473
        %v476 = vor.u32 %v474, %v475
        %v477 = vsub.s32 4294967266, %v472
        %v478 = vadd.s32 %v477, 127
        %v479 = vshll.u32 %v478, 23
        %v480 = vor.u32 4788187, %v479
        %v481 = vand.u32 2147483647, %v480
        %v483 = vcvt.s32.f32 %v476
        %v484 = vmul.f32 %v483, %v481
        %v485 = vxor.u32 %v484, 2147483648
        %v486 = vsel %vm403, %v485, %v484
        %v487 = vsub.s32 4, %v463
        %v488 = vsel %vm403, %v487, %v463
        %v489 = vsel %vm402, %v296, %v486
        %v490 = vsel %vm402, 0, %v488
        %v491 = vcosq.f32.pop %v489
        %v492 = vsinq.f32.pop %v489
        %vm493 = vweird.f32 %v296
        %v494 = vadd.s32 %v490, 3
        %v495 = vand.u32 %v494, 3
        %vm496 = vcmp.lt.s32.totalorder %v495, 2
        %vm497 = vcmp.eq.s32.totalorder %v495, 0
        %v498 = vxor.u32 %v492, 2147483648
        %v499 = vsel %vm497, %v491, %v498
        %vm500 = vcmp.eq.s32.totalorder %v495, 2
        %v501 = vxor.u32 %v491, 2147483648
        %v502 = vsel %vm500, %v501, %v492
        %v503 = vsel %vm496, %v499, %v502
        %v504 = vsel %vm493, nan, %v503
        %505 = vst [vmem:[#allocation3] sm:$0xff] %v504
        %vm506 = vcmp.eq.s32.totalorder %v201, 0
        %v507 = vsel %vm506, 1.0, 0.0
        %v508 = vld [vmem:[#allocation2] sm:$0xff]
        %v509 = vld [vmem:[#allocation3] sm:$0xff]
        %511 = vset.pattern.permute.xlu0 0
        %512 = vperm.xlu0 %511, %v508
        %v513 = vpop.permute.xlu0 %512
        %v515 = vmul.f32 %v513, %v507
        %516 = vrot.lane.b32.xlu0 %v507, 1
        %v517 = vpop.permute.xlu0 %516
        %518 = vrot.lane.b32.xlu0 %v507, 127
        %v519 = vpop.permute.xlu0 %518
        %v520 = vsub.f32 0.0, %v519
        %v521 = vsel %vm203, %v517, %v520
        %523 = vset.pattern.permute.xlu0 0
        %524 = vperm.xlu0 %523, %v509
        %v525 = vpop.permute.xlu0 %524
        %v527 = vmul.f32 %v525, %v521
        %v528 = vadd.f32 %v515, %v527
        %529 = vset.pattern.permute.xlu0 4
        %530 = vperm.xlu0 %529, %v508
        %v531 = vpop.permute.xlu0 %530
        %v533 = vmul.f32 %v531, %v528
        %534 = vrot.lane.b32.xlu0 %v528, 2
        %v535 = vpop.permute.xlu0 %534
        %536 = vrot.lane.b32.xlu0 %v528, 126
        %v537 = vpop.permute.xlu0 %536
        %v538 = vsub.f32 0.0, %v537
        %v539 = vsel %vm206, %v535, %v538
        %540 = vset.pattern.permute.xlu0 4
        %541 = vperm.xlu0 %540, %v509
        %v542 = vpop.permute.xlu0 %541
        %v544 = vmul.f32 %v542, %v539
        %v545 = vadd.f32 %v533, %v544
        %546 = vset.pattern.permute.xlu0 8
        %547 = vperm.xlu0 %546, %v508
        %v548 = vpop.permute.xlu0 %547
        %v550 = vmul.f32 %v548, %v545
        %551 = vrot.lane.b32.xlu0 %v545, 4
        %v552 = vpop.permute.xlu0 %551
        %553 = vrot.lane.b32.xlu0 %v545, 124
        %v554 = vpop.permute.xlu0 %553
        %v555 = vsub.f32 0.0, %v554
        %v556 = vsel %vm209, %v552, %v555
        %557 = vset.pattern.permute.xlu0 8
        %558 = vperm.xlu0 %557, %v509
        %v559 = vpop.permute.xlu0 %558
        %v561 = vmul.f32 %v559, %v556
        %v562 = vadd.f32 %v550, %v561
        %563 = vset.pattern.permute.xlu0 12
        %564 = vperm.xlu0 %563, %v508
        %v565 = vpop.permute.xlu0 %564
        %v567 = vmul.f32 %v565, %v562
        %568 = vrot.lane.b32.xlu0 %v562, 8
        %v569 = vpop.permute.xlu0 %568
        %570 = vrot.lane.b32.xlu0 %v562, 120
        %v571 = vpop.permute.xlu0 %570
        %v572 = vsub.f32 0.0, %v571
        %v573 = vsel %vm212, %v569, %v572
        %574 = vset.pattern.permute.xlu0 12
        %575 = vperm.xlu0 %574, %v509
        %v576 = vpop.permute.xlu0 %575
        %v578 = vmul.f32 %v576, %v573
        %v579 = vadd.f32 %v567, %v578
        %580 = vmatprep.subr.mxu0 0.0
        %581 = vmatpush1.msra.mxu0 %v199
        %582 = vmatprep.subr.mxu0 0.0
        %583 = vmatpush1.msra.mxu0 %v198
        %584 = vmatprep.subr.mxu0 0.0
        %585 = vmatpush1.msra.mxu0 %v197
        %586 = vmatprep.subr.mxu0 0.0
        %587 = vmatpush1.msra.mxu0 %v196
        %588 = vmatprep.subr.mxu0 0.0
        %589 = vmatpush1.msra.mxu0 %v195
        %590 = vmatprep.subr.mxu0 0.0
        %591 = vmatpush1.msra.mxu0 %v194
        %592 = vmatprep.subr.mxu0 0.0
        %593 = vmatpush1.msra.mxu0 %v193
        %594 = vmatprep.subr.mxu0 0.0
        %595 = vmatpush1.msra.mxu0 %v192
        %596 = vmatprep.subr.mxu0 0.0
        %597 = vmatpush1.msra.mxu0 %v191
        %598 = vmatprep.subr.mxu0 0.0
        %599 = vmatpush1.msra.mxu0 %v190
        %600 = vmatprep.subr.mxu0 0.0
        %601 = vmatpush1.msra.mxu0 %v189
        %602 = vmatprep.subr.mxu0 0.0
        %603 = vmatpush1.msra.mxu0 %v188
        %604 = vmatprep.subr.mxu0 0.0
        %605 = vmatpush1.msra.mxu0 %v187
        %606 = vmatprep.subr.mxu0 0.0
        %607 = vmatpush1.msra.mxu0 %v186
        %608 = vmatprep.subr.mxu0 0.0
        %609 = vmatpush1.msra.mxu0 %v185
        %610 = vmatprep.subr.mxu0 0.0
        %611 = vmatpush1.msra.mxu0 %v184
        %612 = vmatprep.subr.mxu0 0.0
        %613 = vmatpush2.msra.mxu0 0.0
        %614 = vmatprep.subr.mxu0 0.0
        %615 = vmatpush2.msra.mxu0 0.0
        %616 = vmatprep.subr.mxu0 0.0
        %617 = vmatpush2.msra.mxu0 0.0
        %618 = vmatprep.subr.mxu0 0.0
        %619 = vmatpush2.msra.mxu0 0.0
        %620 = vmatprep.subr.mxu0 0.0
        %621 = vmatpush2.msra.mxu0 0.0
        %622 = vmatprep.subr.mxu0 0.0
        %623 = vmatpush2.msra.mxu0 0.0
        %624 = vmatprep.subr.mxu0 0.0
        %625 = vmatpush2.msra.mxu0 0.0
        %626 = vmatprep.subr.mxu0 0.0
        %627 = vmatpush2.msra.mxu0 0.0
        %628 = vmatprep.subr.mxu0 0.0
        %629 = vmatpush2.msra.mxu0 0.0
        %630 = vmatprep.subr.mxu0 0.0
        %631 = vmatpush2.msra.mxu0 0.0
        %632 = vmatprep.subr.mxu0 0.0
        %633 = vmatpush2.msra.mxu0 0.0
        %634 = vmatprep.subr.mxu0 0.0
        %635 = vmatpush2.msra.mxu0 0.0
        %636 = vmatprep.subr.mxu0 0.0
        %637 = vmatpush2.msra.mxu0 0.0
        %638 = vmatprep.subr.mxu0 0.0
        %639 = vmatpush2.msra.mxu0 0.0
        %640 = vmatprep.subr.mxu0 0.0
        %641 = vmatpush2.msra.mxu0 0.0
        %642 = vmatprep.subr.mxu0 0.0
        %643 = vmatpush2.msra.mxu0 0.0
        %644 = vmatprep.mubr.f32.mxu0 0.0
        %645 = vmatmul.mubr.f32.gmra.mxu0 %v579
        %v646 = vpop.f32.mrf.mxu0
        %v647 = vadd.f32 0.0, %v646
        %v648 = vpop.f32.mrf.mxu0
        %649 = vdwg.mxu0
        %650 = vset.pattern.permute.xlu0 1
        %651 = vperm.xlu0 %650, %v508
        %v652 = vpop.permute.xlu0 %651
        %v654 = vmul.f32 %v652, %v647
        %655 = vrot.lane.b32.xlu0 %v647, 1
        %v656 = vpop.permute.xlu0 %655
        %657 = vrot.lane.b32.xlu0 %v647, 127
        %v658 = vpop.permute.xlu0 %657
        %v659 = vsub.f32 0.0, %v658
        %v660 = vsel %vm203, %v656, %v659
        %661 = vset.pattern.permute.xlu0 1
        %662 = vperm.xlu0 %661, %v509
        %v663 = vpop.permute.xlu0 %662
        %v665 = vmul.f32 %v663, %v660
        %v666 = vadd.f32 %v654, %v665
        %667 = vset.pattern.permute.xlu0 5
        %668 = vperm.xlu0 %667, %v508
        %v669 = vpop.permute.xlu0 %668
        %v671 = vmul.f32 %v669, %v666
        %672 = vrot.lane.b32.xlu0 %v666, 2
        %v673 = vpop.permute.xlu0 %672
        %674 = vrot.lane.b32.xlu0 %v666, 126
        %v675 = vpop.permute.xlu0 %674
        %v676 = vsub.f32 0.0, %v675
        %v677 = vsel %vm206, %v673, %v676
        %678 = vset.pattern.permute.xlu0 5
        %679 = vperm.xlu0 %678, %v509
        %v680 = vpop.permute.xlu0 %679
        %v682 = vmul.f32 %v680, %v677
        %v683 = vadd.f32 %v671, %v682
        %684 = vset.pattern.permute.xlu0 9
        %685 = vperm.xlu0 %684, %v508
        %v686 = vpop.permute.xlu0 %685
        %v688 = vmul.f32 %v686, %v683
        %689 = vrot.lane.b32.xlu0 %v683, 4
        %v690 = vpop.permute.xlu0 %689
        %691 = vrot.lane.b32.xlu0 %v683, 124
        %v692 = vpop.permute.xlu0 %691
        %v693 = vsub.f32 0.0, %v692
        %v694 = vsel %vm209, %v690, %v693
        %695 = vset.pattern.permute.xlu0 9
        %696 = vperm.xlu0 %695, %v509
        %v697 = vpop.permute.xlu0 %696
        %v699 = vmul.f32 %v697, %v694
        %v700 = vadd.f32 %v688, %v699
        %701 = vset.pattern.permute.xlu0 13
        %702 = vperm.xlu0 %701, %v508
        %v703 = vpop.permute.xlu0 %702
        %v705 = vmul.f32 %v703, %v700
        %706 = vrot.lane.b32.xlu0 %v700, 8
        %v707 = vpop.permute.xlu0 %706
        %708 = vrot.lane.b32.xlu0 %v700, 120
        %v709 = vpop.permute.xlu0 %708
        %v710 = vsub.f32 0.0, %v709
        %v711 = vsel %vm212, %v707, %v710
        %712 = vset.pattern.permute.xlu0 13
        %713 = vperm.xlu0 %712, %v509
        %v714 = vpop.permute.xlu0 %713
        %v716 = vmul.f32 %v714, %v711
        %v717 = vadd.f32 %v705, %v716
        %718 = vmatprep.subr.mxu0 0.0
        %719 = vmatpush1.msra.mxu0 %v199
        %720 = vmatprep.subr.mxu0 0.0
        %721 = vmatpush1.msra.mxu0 %v198
        %722 = vmatprep.subr.mxu0 0.0
        %723 = vmatpush1.msra.mxu0 %v197
        %724 = vmatprep.subr.mxu0 0.0
        %725 = vmatpush1.msra.mxu0 %v196
        %726 = vmatprep.subr.mxu0 0.0
        %727 = vmatpush1.msra.mxu0 %v195
        %728 = vmatprep.subr.mxu0 0.0
        %729 = vmatpush1.msra.mxu0 %v194
        %730 = vmatprep.subr.mxu0 0.0
        %731 = vmatpush1.msra.mxu0 %v193
        %732 = vmatprep.subr.mxu0 0.0
        %733 = vmatpush1.msra.mxu0 %v192
        %734 = vmatprep.subr.mxu0 0.0
        %735 = vmatpush1.msra.mxu0 %v191
        %736 = vmatprep.subr.mxu0 0.0
        %737 = vmatpush1.msra.mxu0 %v190
        %738 = vmatprep.subr.mxu0 0.0
        %739 = vmatpush1.msra.mxu0 %v189
        %740 = vmatprep.subr.mxu0 0.0
        %741 = vmatpush1.msra.mxu0 %v188
        %742 = vmatprep.subr.mxu0 0.0
        %743 = vmatpush1.msra.mxu0 %v187
        %744 = vmatprep.subr.mxu0 0.0
        %745 = vmatpush1.msra.mxu0 %v186
        %746 = vmatprep.subr.mxu0 0.0
        %747 = vmatpush1.msra.mxu0 %v185
        %748 = vmatprep.subr.mxu0 0.0
        %749 = vmatpush1.msra.mxu0 %v184
        %750 = vmatprep.subr.mxu0 0.0
        %751 = vmatpush2.msra.mxu0 0.0
        %752 = vmatprep.subr.mxu0 0.0
        %753 = vmatpush2.msra.mxu0 0.0
        %754 = vmatprep.subr.mxu0 0.0
        %755 = vmatpush2.msra.mxu0 0.0
        %756 = vmatprep.subr.mxu0 0.0
        %757 = vmatpush2.msra.mxu0 0.0
        %758 = vmatprep.subr.mxu0 0.0
        %759 = vmatpush2.msra.mxu0 0.0
        %760 = vmatprep.subr.mxu0 0.0
        %761 = vmatpush2.msra.mxu0 0.0
        %762 = vmatprep.subr.mxu0 0.0
        %763 = vmatpush2.msra.mxu0 0.0
        %764 = vmatprep.subr.mxu0 0.0
        %765 = vmatpush2.msra.mxu0 0.0
        %766 = vmatprep.subr.mxu0 0.0
        %767 = vmatpush2.msra.mxu0 0.0
        %768 = vmatprep.subr.mxu0 0.0
        %769 = vmatpush2.msra.mxu0 0.0
        %770 = vmatprep.subr.mxu0 0.0
        %771 = vmatpush2.msra.mxu0 0.0
        %772 = vmatprep.subr.mxu0 0.0
        %773 = vmatpush2.msra.mxu0 0.0
        %774 = vmatprep.subr.mxu0 0.0
        %775 = vmatpush2.msra.mxu0 0.0
        %776 = vmatprep.subr.mxu0 0.0
        %777 = vmatpush2.msra.mxu0 0.0
        %778 = vmatprep.subr.mxu0 0.0
        %779 = vmatpush2.msra.mxu0 0.0
        %780 = vmatprep.subr.mxu0 0.0
        %781 = vmatpush2.msra.mxu0 0.0
        %782 = vmatprep.mubr.f32.mxu0 0.0
        %783 = vmatmul.mubr.f32.gmra.mxu0 %v717
        %v784 = vpop.f32.mrf.mxu0
        %v785 = vadd.f32 0.0, %v784
        %v786 = vpop.f32.mrf.mxu0
        %787 = vdwg.mxu0
        %788 = vset.pattern.permute.xlu0 2
        %789 = vperm.xlu0 %788, %v508
        %v790 = vpop.permute.xlu0 %789
        %v792 = vmul.f32 %v790, %v785
        %793 = vrot.lane.b32.xlu0 %v785, 1
        %v794 = vpop.permute.xlu0 %793
        %795 = vrot.lane.b32.xlu0 %v785, 127
        %v796 = vpop.permute.xlu0 %795
        %v797 = vsub.f32 0.0, %v796
        %v798 = vsel %vm203, %v794, %v797
        %799 = vset.pattern.permute.xlu0 2
        %800 = vperm.xlu0 %799, %v509
        %v801 = vpop.permute.xlu0 %800
        %v803 = vmul.f32 %v801, %v798
        %v804 = vadd.f32 %v792, %v803
        %805 = vset.pattern.permute.xlu0 6
        %806 = vperm.xlu0 %805, %v508
        %v807 = vpop.permute.xlu0 %806
        %v809 = vmul.f32 %v807, %v804
        %810 = vrot.lane.b32.xlu0 %v804, 2
        %v811 = vpop.permute.xlu0 %810
        %812 = vrot.lane.b32.xlu0 %v804, 126
        %v813 = vpop.permute.xlu0 %812
        %v814 = vsub.f32 0.0, %v813
        %v815 = vsel %vm206, %v811, %v814
        %816 = vset.pattern.permute.xlu0 6
        %817 = vperm.xlu0 %816, %v509
        %v818 = vpop.permute.xlu0 %817
        %v820 = vmul.f32 %v818, %v815
        %v821 = vadd.f32 %v809, %v820
        %822 = vset.pattern.permute.xlu0 10
        %823 = vperm.xlu0 %822, %v508
        %v824 = vpop.permute.xlu0 %823
        %v826 = vmul.f32 %v824, %v821
        %827 = vrot.lane.b32.xlu0 %v821, 4
        %v828 = vpop.permute.xlu0 %827
        %829 = vrot.lane.b32.xlu0 %v821, 124
        %v830 = vpop.permute.xlu0 %829
        %v831 = vsub.f32 0.0, %v830
        %v832 = vsel %vm209, %v828, %v831
        %833 = vset.pattern.permute.xlu0 10
        %834 = vperm.xlu0 %833, %v509
        %v835 = vpop.permute.xlu0 %834
        %v837 = vmul.f32 %v835, %v832
        %v838 = vadd.f32 %v826, %v837
        %839 = vset.pattern.permute.xlu0 14
        %840 = vperm.xlu0 %839, %v508
        %v841 = vpop.permute.xlu0 %840
        %v843 = vmul.f32 %v841, %v838
        %844 = vrot.lane.b32.xlu0 %v838, 8
        %v845 = vpop.permute.xlu0 %844
        %846 = vrot.lane.b32.xlu0 %v838, 120
        %v847 = vpop.permute.xlu0 %846
        %v848 = vsub.f32 0.0, %v847
        %v849 = vsel %vm212, %v845, %v848
        %850 = vset.pattern.permute.xlu0 14
        %851 = vperm.xlu0 %850, %v509
        %v852 = vpop.permute.xlu0 %851
        %v854 = vmul.f32 %v852, %v849
        %v855 = vadd.f32 %v843, %v854
        %856 = vmatprep.subr.mxu0 0.0
        %857 = vmatpush1.msra.mxu0 %v199
        %858 = vmatprep.subr.mxu0 0.0
        %859 = vmatpush1.msra.mxu0 %v198
        %860 = vmatprep.subr.mxu0 0.0
        %861 = vmatpush1.msra.mxu0 %v197
        %862 = vmatprep.subr.mxu0 0.0
        %863 = vmatpush1.msra.mxu0 %v196
        %864 = vmatprep.subr.mxu0 0.0
        %865 = vmatpush1.msra.mxu0 %v195
        %866 = vmatprep.subr.mxu0 0.0
        %867 = vmatpush1.msra.mxu0 %v194
        %868 = vmatprep.subr.mxu0 0.0
        %869 = vmatpush1.msra.mxu0 %v193
        %870 = vmatprep.subr.mxu0 0.0
        %871 = vmatpush1.msra.mxu0 %v192
        %872 = vmatprep.subr.mxu0 0.0
        %873 = vmatpush1.msra.mxu0 %v191
        %874 = vmatprep.subr.mxu0 0.0
        %875 = vmatpush1.msra.mxu0 %v190
        %876 = vmatprep.subr.mxu0 0.0
        %877 = vmatpush1.msra.mxu0 %v189
        %878 = vmatprep.subr.mxu0 0.0
        %879 = vmatpush1.msra.mxu0 %v188
        %880 = vmatprep.subr.mxu0 0.0
        %881 = vmatpush1.msra.mxu0 %v187
        %882 = vmatprep.subr.mxu0 0.0
        %883 = vmatpush1.msra.mxu0 %v186
        %884 = vmatprep.subr.mxu0 0.0
        %885 = vmatpush1.msra.mxu0 %v185
        %886 = vmatprep.subr.mxu0 0.0
        %887 = vmatpush1.msra.mxu0 %v184
        %888 = vmatprep.subr.mxu0 0.0
        %889 = vmatpush2.msra.mxu0 0.0
        %890 = vmatprep.subr.mxu0 0.0
        %891 = vmatpush2.msra.mxu0 0.0
        %892 = vmatprep.subr.mxu0 0.0
        %893 = vmatpush2.msra.mxu0 0.0
        %894 = vmatprep.subr.mxu0 0.0
        %895 = vmatpush2.msra.mxu0 0.0
        %896 = vmatprep.subr.mxu0 0.0
        %897 = vmatpush2.msra.mxu0 0.0
        %898 = vmatprep.subr.mxu0 0.0
        %899 = vmatpush2.msra.mxu0 0.0
        %900 = vmatprep.subr.mxu0 0.0
        %901 = vmatpush2.msra.mxu0 0.0
        %902 = vmatprep.subr.mxu0 0.0
        %903 = vmatpush2.msra.mxu0 0.0
        %904 = vmatprep.subr.mxu0 0.0
        %905 = vmatpush2.msra.mxu0 0.0
        %906 = vmatprep.subr.mxu0 0.0
        %907 = vmatpush2.msra.mxu0 0.0
        %908 = vmatprep.subr.mxu0 0.0
        %909 = vmatpush2.msra.mxu0 0.0
        %910 = vmatprep.subr.mxu0 0.0
        %911 = vmatpush2.msra.mxu0 0.0
        %912 = vmatprep.subr.mxu0 0.0
        %913 = vmatpush2.msra.mxu0 0.0
        %914 = vmatprep.subr.mxu0 0.0
        %915 = vmatpush2.msra.mxu0 0.0
        %916 = vmatprep.subr.mxu0 0.0
        %917 = vmatpush2.msra.mxu0 0.0
        %918 = vmatprep.subr.mxu0 0.0
        %919 = vmatpush2.msra.mxu0 0.0
        %920 = vmatprep.mubr.f32.mxu0 0.0
        %921 = vmatmul.mubr.f32.gmra.mxu0 %v855
        %v922 = vpop.f32.mrf.mxu0
        %v923 = vadd.f32 0.0, %v922
        %v924 = vpop.f32.mrf.mxu0
        %925 = vdwg.mxu0
        %926 = vset.pattern.permute.xlu0 3
        %927 = vperm.xlu0 %926, %v508
        %v928 = vpop.permute.xlu0 %927
        %v930 = vmul.f32 %v928, %v923
        %931 = vrot.lane.b32.xlu0 %v923, 1
        %v932 = vpop.permute.xlu0 %931
        %933 = vrot.lane.b32.xlu0 %v923, 127
        %v934 = vpop.permute.xlu0 %933
        %v935 = vsub.f32 0.0, %v934
        %v936 = vsel %vm203, %v932, %v935
        %937 = vset.pattern.permute.xlu0 3
        %938 = vperm.xlu0 %937, %v509
        %v939 = vpop.permute.xlu0 %938
        %v941 = vmul.f32 %v939, %v936
        %v942 = vadd.f32 %v930, %v941
        %943 = vset.pattern.permute.xlu0 7
        %944 = vperm.xlu0 %943, %v508
        %v945 = vpop.permute.xlu0 %944
        %v947 = vmul.f32 %v945, %v942
        %948 = vrot.lane.b32.xlu0 %v942, 2
        %v949 = vpop.permute.xlu0 %948
        %950 = vrot.lane.b32.xlu0 %v942, 126
        %v951 = vpop.permute.xlu0 %950
        %v952 = vsub.f32 0.0, %v951
        %v953 = vsel %vm206, %v949, %v952
        %954 = vset.pattern.permute.xlu0 7
        %955 = vperm.xlu0 %954, %v509
        %v956 = vpop.permute.xlu0 %955
        %v958 = vmul.f32 %v956, %v953
        %v959 = vadd.f32 %v947, %v958
        %960 = vset.pattern.permute.xlu0 11
        %961 = vperm.xlu0 %960, %v508
        %v962 = vpop.permute.xlu0 %961
        %v964 = vmul.f32 %v962, %v959
        %965 = vrot.lane.b32.xlu0 %v959, 4
        %v966 = vpop.permute.xlu0 %965
        %967 = vrot.lane.b32.xlu0 %v959, 124
        %v968 = vpop.permute.xlu0 %967
        %v969 = vsub.f32 0.0, %v968
        %v970 = vsel %vm209, %v966, %v969
        %971 = vset.pattern.permute.xlu0 11
        %972 = vperm.xlu0 %971, %v509
        %v973 = vpop.permute.xlu0 %972
        %v975 = vmul.f32 %v973, %v970
        %v976 = vadd.f32 %v964, %v975
        %977 = vset.pattern.permute.xlu0 15
        %978 = vperm.xlu0 %977, %v508
        %v979 = vpop.permute.xlu0 %978
        %v981 = vmul.f32 %v979, %v976
        %982 = vrot.lane.b32.xlu0 %v976, 8
        %v983 = vpop.permute.xlu0 %982
        %984 = vrot.lane.b32.xlu0 %v976, 120
        %v985 = vpop.permute.xlu0 %984
        %v986 = vsub.f32 0.0, %v985
        %v987 = vsel %vm212, %v983, %v986
        %988 = vset.pattern.permute.xlu0 15
        %989 = vperm.xlu0 %988, %v509
        %v990 = vpop.permute.xlu0 %989
        %v992 = vmul.f32 %v990, %v987
        %v993 = vadd.f32 %v981, %v992
        %v994 = vmul.f32 %v993, %v993
        %v995 = vlaneseq
        %v996 = vshrl.u32 %v995, 7
        %v997 = vsub.s32 0, %v996
        %v998 = vrot.slane %v183, %v997
        %v999 = vmul.f32 %v994, %v998
        %1000 = vadd.xlane.f32.xlu0 %v999
        %v1001 = vpop.xlane.xlu0 %1000
        %v1002 = vlaneseq
        %v1003 = vshrl.u32 %v1002, 7
        %v1004 = vsub.s32 0, %v1003
        %v1005 = vrot.slane %v179, %v1004
        %v1006 = vmul.f32 %v1001, %v1005
        %v1007 = vlaneseq
        %v1008 = vshrl.u32 %v1007, 7
        %v1009 = vsub.s32 0, %v1008
        %v1010 = vrot.slane %v180, %v1009
        %v1011 = vadd.f32 %v1006, %v1010
        %v1012 = vlaneseq
        %v1013 = vshrl.u32 %v1012, 7
        %v1014 = vsub.s32 0, %v1013
        %v1015 = vrot.slane %v181, %v1014
        %v1016 = vmul.f32 %v1001, %v1015
        %v1017 = vlaneseq
        %v1018 = vshrl.u32 %v1017, 7
        %v1019 = vsub.s32 0, %v1018
        %v1020 = vrot.slane %v182, %v1019
        %v1021 = vadd.f32 %v1016, %v1020
        %vm1022 = vcmp.lt.s32.totalorder %v201, 10
        %v1023 = vsel %vm1022, %v1011, -1e+30
        %1024 = vmax.xlane.f32.xlu0 %v1023
        %v1025 = vpop.xlane.xlu0 %1024
        %v1026 = vsub.f32 %v1023, %v1025
        %v1027 = vmul.f32 %v1026, 1.442695
        %v1028 = vpow.pop %v1027
        %v1029 = vsel %vm1022, %v1028, 0.0
        %1030 = vadd.xlane.f32.xlu0 %v1029
        %v1031 = vpop.xlane.xlu0 %1030
        %v1032 = vrcp.pop %v1031
        %v1033 = vmul.f32 %v1029, %v1032
        %v1034 = vadd.f32 %v1033, %v1021
        %1035 = vst [vmem:[%s173] sm:$0xff] %v1034
        %s1036 = sand.u32 %s75, 1
        %s1037 = scalar_lea.sflag [#allocation6], %s1036
        %s1038 = sand.u32 %s75, 1
        %s1039 = smul.addr %s1038, 8
        %s1040 = scalar_lea.vmem [#allocation9], %s1039
        // Predicated region
        $region37: #{tpu_custom_call.1} parent=27 // pred_check
          %p1041 = pneg %p85
        $region38: #{tpu_custom_call.1} parent=27 // pred_check_branch
          %1043 = sbr.rel (%p1041) target = $region40
        $region39: #{tpu_custom_call.1} parent=27 // pred_region
          %s1045 = ssub.s32 128, 128
          %1046 = vsyncadd %s1037, %s1045
          %s1047 = smul.addr %s20, 128
          %s1048 = scalar_lea.hbm %s2, %s1047
          %s1050 = sshll.u32 %s1040, 4
          %s1051 = int_to_ptr.vmem [resolvable:$true] %s1050
          %1053 = dma.vmem_to_hbm [thread:$0]  %s1051, 128, %s1048, %s1037
        $region40: #{tpu_custom_call.1} parent=27 // pred_fallthru
          _
      $region28: #{tpu_custom_call.1} parent=5 // pred_fallthru
        _
      %p1054 = scmp.le.s32.totalorder 2, %s15
      // Predicated region
      $region41: #{tpu_custom_call.1} parent=5 // pred_check
        %p1055 = pneg %p1054
      $region42: #{tpu_custom_call.1} parent=5 // pred_check_branch
        %1057 = sbr.rel (%p1055) target = $region44
      $region43: #{tpu_custom_call.1} parent=5 // pred_region
        %s1058 = ssub.s32 %s15, 2
        // Predicated region
        $region45: #{tpu_custom_call.1} parent=43 // pred_check
          %p1059 = pneg %p91
        $region46: #{tpu_custom_call.1} parent=43 // pred_check_branch
          %1061 = sbr.rel (%p1059) target = $region48
        $region47: #{tpu_custom_call.1} parent=43 // pred_region
          %s1062 = sand.u32 %s76, 1
          %s1063 = scalar_lea.sflag [#allocation6], %s1062
          %s1064 = sand.u32 %s76, 1
          %s1065 = smul.addr %s1064, 8
          %s1066 = scalar_lea.vmem [#allocation9], %s1065
          %1067 = dma.done %s1063, 128
        $region48: #{tpu_custom_call.1} parent=43 // pred_fallthru
          _
      $region44: #{tpu_custom_call.1} parent=5 // pred_fallthru
        _
    $region6: #{tpu_custom_call.1} parent=1 // loop_footer
      %s19 = sadd.s32 1, %s15
    $region7: #{tpu_custom_call.1} parent=1 // loop_footer_branch
      %14 = sbr.rel target = $region3
    $region8: #{tpu_custom_call.1} parent=1 // loop_exit
      _
    %1068 = vsyncpa [#allocation5], 1
    %s1069 = scalar_lea.sflag [#allocation5], 1
    %1070 = vsyncpa %s1069, 1
    %1071 = vsyncpa [#allocation8], 1
    %1072 = vsyncpa [#allocation6], 1
    %s1073 = scalar_lea.sflag [#allocation6], 1
    %1074 = vsyncpa %s1073, 1

</llo_original>
